<compile_context>
chip_gen: v5e
topology: v5e:2x2
jax: 0.10.0
libtpu: 0.0.40
codegen_flags: <defaults>
</compile_context>

<pallas_src>
import jax
import jax.numpy as jnp
from jax.experimental import pallas as pl
from jax.experimental.pallas import tpu as pltpu


# ---------------------------------------------------------------------------
# helpers
# ---------------------------------------------------------------------------
def _round_up(x, m):
    return ((x + m - 1) // m) * m


def _pad_axis(x, axis, size, value=0):
    pad = size - x.shape[axis]
    if pad <= 0:
        return x
    widths = [(0, 0)] * x.ndim
    widths[axis] = (0, pad)
    return jnp.pad(x, widths, constant_values=value)


def _fuse_gates(w4, in_pad, h_pad):
    """(4, In, H) gate-stacked weight -> zero-padded fused (In_pad, 4*H_pad)."""
    w4 = _pad_axis(_pad_axis(w4, 1, in_pad), 2, h_pad)
    return jnp.transpose(w4, (1, 0, 2)).reshape(in_pad, 4 * h_pad)


def _fuse_bias(b4, h_pad):
    """(4, 1, H) gate-stacked bias -> zero-padded fused (1, 4*H_pad)."""
    b4 = _pad_axis(b4, 2, h_pad)
    return jnp.transpose(b4, (1, 0, 2)).reshape(1, 4 * h_pad)


# ---------------------------------------------------------------------------
# Fused Pallas kernel: encoder LSTM + greedy attention decoder
# ---------------------------------------------------------------------------
def _seq2seq_kernel(emb_in_ref, enc_mask_ref, attn_mask_ref, pers_ref, emb_start_ref,
                    word_ebd_ref,
                    enc_wih_ref, enc_whh_ref, enc_b_ref,
                    dec_wih_w_ref, dec_wih_p_ref, dec_whh_ref, dec_b_ref,
                    wc_h_ref, wc_ctx_ref, bc_ref, wo_ref, bo_ref,
                    out_hbm_ref,
                    enc_tbh, enc_bth, stage, out_sem):
    f32 = jnp.float32
    bf16 = jnp.bfloat16
    T = emb_in_ref.shape[0]
    B = pers_ref.shape[0]
    Hp = wc_h_ref.shape[0]
    Vp = wo_ref.shape[1]
    max_length = out_hbm_ref.shape[0]
    gi = pl.program_id(0)                      # batch block handled by this core

    def gates(pre):                            # fused (B, 4*Hp) -> i, f, g, o
        i_g = jax.nn.sigmoid(pre[:, 0 * Hp:1 * Hp])
        f_g = jax.nn.sigmoid(pre[:, 1 * Hp:2 * Hp])
        g_g = jnp.tanh(pre[:, 2 * Hp:3 * Hp])
        o_g = jax.nn.sigmoid(pre[:, 3 * Hp:4 * Hp])
        return i_g, f_g, g_g, o_g

    # ---------------- encoder (fori_loop over time, full-tile output stores) ----------
    enc_b = jnp.broadcast_to(enc_b_ref[...], (B, 4 * Hp))        # hoisted broadcast

    def enc_step(t, carry):
        h, c = carry
        x = emb_in_ref[t].astype(bf16)                           # (B, Dw_pad)
        m = enc_mask_ref[t]                                      # (B, 1)
        pre = (jnp.dot(x, enc_wih_ref[...], preferred_element_type=f32)
               + jnp.dot(h.astype(bf16), enc_whh_ref[...], preferred_element_type=f32)
               + enc_b)                                          # (B, 4*Hp), 2 MXU issues
        i_g, f_g, g_g, o_g = gates(pre)
        c_new = f_g * c + i_g * g_g
        h_new = o_g * jnp.tanh(c_new)
        # pack_padded_sequence semantics: freeze state and zero outputs past `lengths`.
        h = m * h_new + (1.0 - m) * h
        c = m * c_new + (1.0 - m) * c
        enc_tbh[t] = m * h_new                                   # full (B, Hp) tile store
        return h, c

    h_enc, c_enc = jax.lax.fori_loop(
        0, T, enc_step, (jnp.zeros((B, Hp), f32), jnp.zeros((B, Hp), f32)))

    # one-time layout change (T, B, H) -> (B, T, H); stays in VMEM as bf16
    enc_bth[...] = pltpu.einshape("tbh->bth", enc_tbh[...]).astype(bf16)

    # ---------------- greedy decoder (non teacher-forcing path) ----------------------
    attn_mask = attn_mask_ref[...]                               # (B, 1, T) additive
    # persona + bias contribution is constant across decode steps -> hoist out of loop.
    pers_pre = (jnp.dot(pers_ref[...].astype(bf16), dec_wih_p_ref[...],
                        preferred_element_type=f32)
                + jnp.broadcast_to(dec_b_ref[...], (B, 4 * Hp)))
    bc = jnp.broadcast_to(bc_ref[...], (B, Hp))
    bo = jnp.broadcast_to(bo_ref[...], (B, Vp))
    iota = jax.lax.broadcasted_iota(jnp.int32, (B, Vp), 1)

    def dec_step(s, carry):
        h_d, c_d, emb = carry
        slot = s % 2

        # decoder LSTM cell (input concat split into word / persona matmuls)
        pre = (jnp.dot(emb.astype(bf16), dec_wih_w_ref[...], preferred_element_type=f32)
               + jnp.dot(h_d.astype(bf16), dec_whh_ref[...], preferred_element_type=f32)
               + pers_pre)
        i_g, f_g, g_g, o_g = gates(pre)
        c_new = f_g * c_d + i_g * g_g
        h_new = o_g * jnp.tanh(c_new)

        # dot attention on the MXU (flash-style batched einsums), masked by lengths
        enc = enc_bth[...]                                       # (B, T, Hp) bf16
        q = h_new[:, None, :].astype(bf16)                       # (B, 1, Hp)
        sc = jnp.einsum('bqh,bth->bqt', q, enc,
                        preferred_element_type=f32) + attn_mask  # (B, 1, T)
        mx = jnp.max(sc, axis=-1, keepdims=True)
        ex = jnp.exp(sc - mx)
        attn = ex * pl.reciprocal(jnp.sum(ex, axis=-1, keepdims=True), approx=True)
        ctx = jnp.einsum('bqt,bth->bqh', attn.astype(bf16), enc,
                         preferred_element_type=f32)[:, 0, :]    # (B, Hp)

        # tanh(concat(h, ctx) @ Wc) == tanh(h @ Wc_h + ctx @ Wc_ctx)  (no concat copy)
        concat_out = jnp.tanh(
            jnp.dot(h_new.astype(bf16), wc_h_ref[...], preferred_element_type=f32)
            + jnp.dot(ctx.astype(bf16), wc_ctx_ref[...], preferred_element_type=f32)
            + bc)
        # TODO(synk): for 30k+ vocabs on v7x, keep wo in HBM and V-block-tile this
        #             projection with an online softmax instead of one resident matmul.
        logits = jnp.dot(concat_out.astype(bf16), wo_ref[...],
                         preferred_element_type=f32) + bo        # (B, Vp) f32

        lm = jnp.max(logits, axis=-1, keepdims=True)
        le = jnp.exp(logits - lm)
        probs = le / jnp.sum(le, axis=-1, keepdims=True)         # exact output softmax

        # stream probs to HBM: double-buffered VMEM staging + per-step async copy
        @pl.when(s >= 2)
        def _():                                                  # slot reused -> drain
            pltpu.make_async_copy(stage.at[slot], out_hbm_ref.at[s - 2, gi],
                                  out_sem.at[slot]).wait()
        stage[slot] = probs
        pltpu.make_async_copy(stage.at[slot], out_hbm_ref.at[s, gi],
                              out_sem.at[slot]).start()

        # greedy next token: first-argmax -> one-hot -> re-embed on the MXU
        # TODO(synk): for large vocabs replace the one-hot matmul with a scalar gather
        #             (tok -> SMEM -> per-row DMA of word_ebd rows kept in HBM).
        tok = jnp.min(jnp.where(logits >= lm, iota, Vp), axis=-1, keepdims=True)
        onehot = (iota == tok).astype(bf16)
        emb_next = jnp.dot(onehot, word_ebd_ref[...],
                           preferred_element_type=f32)           # (B, Dw_pad)
        return h_new, c_new, emb_next

    # cvt_hidden: same layer count -> decoder starts from the encoder's final (h, c).
    jax.lax.fori_loop(0, max_length, dec_step, (h_enc, c_enc, emb_start_ref[...]))

    # drain the (at most two) outstanding output copies
    for j in range(min(max_length, 2)):
        s_last = max_length - 1 - j
        pltpu.make_async_copy(stage.at[s_last % 2], out_hbm_ref.at[s_last, gi],
                              out_sem.at[s_last % 2]).wait()


# ---------------------------------------------------------------------------
# Parameters (deterministic, in-script; gate axis stacked: (4, In, H))
# ---------------------------------------------------------------------------
def init_params(key, V, Dw, P, Dp, H):
    ks = jax.random.split(key, 10)
    s = 0.1
    return dict(
        word_ebd=jax.random.normal(ks[0], (V, Dw), jnp.float32) * s,
        persona_ebd=jnp.zeros((P, Dp), jnp.float32),            # torch.zeros in __init__
        enc_wih=jax.random.normal(ks[1], (4, Dw, H), jnp.float32) * s,
        enc_whh=jax.random.normal(ks[2], (4, H, H), jnp.float32) * s,
        enc_b=jax.random.normal(ks[3], (4, 1, H), jnp.float32) * s,   # b_ih + b_hh
        dec_wih_w=jax.random.normal(ks[4], (4, Dw, H), jnp.float32) * s,
        dec_wih_p=jax.random.normal(ks[5], (4, Dp, H), jnp.float32) * s,
        dec_whh=jax.random.normal(ks[6], (4, H, H), jnp.float32) * s,
        dec_b=jnp.zeros((4, 1, H), jnp.float32),
        wc_h=jax.random.normal(ks[7], (H, H), jnp.float32) * s,       # concat proj, h half
        wc_ctx=jax.random.normal(ks[8], (H, H), jnp.float32) * s,     # concat proj, ctx half
        bc=jnp.zeros((1, H), jnp.float32),
        wo=jax.random.normal(ks[9], (H, V), jnp.float32) * s,
        bo=jnp.zeros((1, V), jnp.float32),
    )


# ---------------------------------------------------------------------------
# Forward pass: one pallas_call for the entire encoder + greedy decode
# ---------------------------------------------------------------------------
def seq2seq_forward(params, input_var, lengths, target_var, speaker_var,
                    max_length, tf_rate=0.0):
    del tf_rate  # tf_rate == 0 -> teacher-forcing branch is never taken
    f32, bf16 = jnp.float32, jnp.bfloat16
    T, B = input_var.shape
    V, Dw = params['word_ebd'].shape
    Dp = params['persona_ebd'].shape[1]
    H = params['wc_h'].shape[0]

    B_BLK = 8                               # one 8-sublane batch block per grid step
    B_pad = max(_round_up(B, B_BLK), B_BLK)
    G = B_pad // B_BLK                      # batch blocks -> parallel over TensorCores
    V_pad = _round_up(V, 128)               # lane-dense vocab
    H_pad = _round_up(H, 128)               # lane-aligned hidden / gate slices
    Dw_pad = _round_up(Dw, 128)
    Dp_pad = _round_up(Dp, 128)

    # batch padding (padded rows are sliced off at the end)
    inp = _pad_axis(input_var, 1, B_pad)
    tgt0 = _pad_axis(target_var[0], 0, B_pad)
    spk = _pad_axis(speaker_var, 0, B_pad)
    lens = _pad_axis(lengths, 0, B_pad, value=T)

    # one-time gathers outside the serial loops
    emb_in = _pad_axis(jnp.take(params['word_ebd'], inp, axis=0), 2, Dw_pad)
    emb_start = _pad_axis(jnp.take(params['word_ebd'], tgt0, axis=0), 1, Dw_pad)
    pers = _pad_axis(jnp.take(params['persona_ebd'], spk, axis=0), 1, Dp_pad)

    # length masks (pack_padded_sequence + attention masking)
    t_idx = jnp.arange(T, dtype=jnp.int32)
    valid_tb = (t_idx[:, None] < lens[None, :]).astype(f32)            # (T, B_pad)
    enc_mask = valid_tb[:, :, None]                                    # (T, B_pad, 1)
    attn_mask = jnp.where(valid_tb.T > 0.5, 0.0, -1e30).astype(f32)[:, None, :]

    # fused + padded bf16 weights (zero padding keeps the math exact); biases f32
    enc_wih_f = _fuse_gates(params['enc_wih'], Dw_pad, H_pad).astype(bf16)
    enc_whh_f = _fuse_gates(params['enc_whh'], H_pad, H_pad).astype(bf16)
    enc_b_f = _fuse_bias(params['enc_b'], H_pad)
    dec_wih_w_f = _fuse_gates(params['dec_wih_w'], Dw_pad, H_pad).astype(bf16)
    dec_wih_p_f = _fuse_gates(params['dec_wih_p'], Dp_pad, H_pad).astype(bf16)
    dec_whh_f = _fuse_gates(params['dec_whh'], H_pad, H_pad).astype(bf16)
    dec_b_f = _fuse_bias(params['dec_b'], H_pad)
    wc_h_p = _pad_axis(_pad_axis(params['wc_h'], 0, H_pad), 1, H_pad).astype(bf16)
    wc_ctx_p = _pad_axis(_pad_axis(params['wc_ctx'], 0, H_pad), 1, H_pad).astype(bf16)
    bc_p = _pad_axis(params['bc'], 1, H_pad)
    wo_p = _pad_axis(_pad_axis(params['wo'], 0, H_pad), 1, V_pad).astype(bf16)
    bo_p = _pad_axis(params['bo'], 1, V_pad, value=-1e30)   # padded cols: prob 0, never argmax'd
    word_ebd_p = _pad_axis(_pad_axis(params['word_ebd'], 0, V_pad), 1, Dw_pad).astype(bf16)

    operands = (emb_in, enc_mask, attn_mask, pers, emb_start, word_ebd_p,
                enc_wih_f, enc_whh_f, enc_b_f,
                dec_wih_w_f, dec_wih_p_f, dec_whh_f, dec_b_f,
                wc_h_p, wc_ctx_p, bc_p, wo_p, bo_p)

    # scoped-VMEM budget sized to the actual resident footprint (+ double-buffer slack)
    resident = sum(int(a.size) * a.dtype.itemsize for a in operands)
    scratch_bytes = (T * B_BLK * H_pad * 4 + B_BLK * T * H_pad * 2
                     + 2 * B_BLK * V_pad * 4)
    vmem_limit = int(min(64 * 1024 * 1024,
                         max(32 * 1024 * 1024,
                             2 * (resident + scratch_bytes) + (4 << 20))))

    vmem_full = pl.BlockSpec(memory_space=pltpu.MemorySpace.VMEM)
    out_full = pl.pallas_call(
        _seq2seq_kernel,
        out_shape=jax.ShapeDtypeStruct((max_length, G, B_BLK, V_pad), jnp.float32),
        grid=(G,),
        in_specs=[
            pl.BlockSpec((T, B_BLK, Dw_pad), lambda i: (0, i, 0)),   # emb_in
            pl.BlockSpec((T, B_BLK, 1), lambda i: (0, i, 0)),        # enc_mask
            pl.BlockSpec((B_BLK, 1, T), lambda i: (i, 0, 0)),        # attn_mask
            pl.BlockSpec((B_BLK, Dp_pad), lambda i: (i, 0)),         # pers
            pl.BlockSpec((B_BLK, Dw_pad), lambda i: (i, 0)),         # emb_start
        ] + [vmem_full] * 13,                                        # resident weights
        out_specs=pl.BlockSpec(memory_space=pl.ANY),                 # streamed to HBM
        scratch_shapes=[
            pltpu.VMEM((T, B_BLK, H_pad), jnp.float32),              # encoder outs (T,B,H)
            pltpu.VMEM((B_BLK, T, H_pad), jnp.bfloat16),             # encoder outs (B,T,H)
            pltpu.VMEM((2, B_BLK, V_pad), jnp.float32),              # probs staging (x2)
            pltpu.SemaphoreType.DMA((2,)),
        ],
        compiler_params=pltpu.CompilerParams(
            dimension_semantics=("parallel",),
            vmem_limit_bytes=vmem_limit),
    )(*operands)

    out = out_full.reshape(max_length, B_pad, V_pad)
    # Padded batch rows / vocab lanes are sliced off here; with B % 8 == 0 and
    # V % 128 == 0 this slice is a no-op.
    return out[:, :B, :V]                                            # (max_length, B, V)


if __name__ == "__main__":
    V, Dw, P, Dp, H = 64, 32, 4, 16, 32
    T, B, max_length = 8, 2, 6

    key = jax.random.PRNGKey(0)
    kp, k1, k2, k3 = jax.random.split(key, 4)
    params = init_params(kp, V, Dw, P, Dp, H)

    input_var = jax.random.randint(k1, (T, B), 0, V, dtype=jnp.int32)
    target_var = jax.random.randint(k2, (T, B), 0, V, dtype=jnp.int32)
    speaker_var = jax.random.randint(k3, (B,), 0, P, dtype=jnp.int32)
    lengths = jnp.full((B,), T, dtype=jnp.int32)

    fwd = jax.jit(seq2seq_forward, static_argnames=("max_length", "tf_rate"))
    out = fwd(params, input_var, lengths, target_var, speaker_var,
              max_length=max_length, tf_rate=0.0)
    jax.block_until_ready(out)

    assert out.shape == (max_length, B, V), out.shape
    assert out.dtype == jnp.float32
    assert bool(jnp.all(jnp.isfinite(out)))
    assert bool(jnp.allclose(out.sum(-1), 1.0, atol=1e-3))   # exact output softmax
    print("KERNEL_OK")
</pallas_src>

<mosaic_0001>
module attributes {stable_mosaic.version = 11 : i64} {
  func.func @_seq2seq_kernel(%arg0: i32, %arg1: memref<8x8x128xf32, #tpu.memory_space<vmem>>, %arg2: memref<8x8x1xf32, #tpu.memory_space<vmem>>, %arg3: memref<8x1x8xf32, #tpu.memory_space<vmem>>, %arg4: memref<8x128xf32, #tpu.memory_space<vmem>>, %arg5: memref<8x128xf32, #tpu.memory_space<vmem>>, %arg6: memref<128x128xbf16, #tpu.memory_space<vmem>>, %arg7: memref<128x512xbf16, #tpu.memory_space<vmem>>, %arg8: memref<128x512xbf16, #tpu.memory_space<vmem>>, %arg9: memref<1x512xf32, #tpu.memory_space<vmem>>, %arg10: memref<128x512xbf16, #tpu.memory_space<vmem>>, %arg11: memref<128x512xbf16, #tpu.memory_space<vmem>>, %arg12: memref<128x512xbf16, #tpu.memory_space<vmem>>, %arg13: memref<1x512xf32, #tpu.memory_space<vmem>>, %arg14: memref<128x128xbf16, #tpu.memory_space<vmem>>, %arg15: memref<128x128xbf16, #tpu.memory_space<vmem>>, %arg16: memref<1x128xf32, #tpu.memory_space<vmem>>, %arg17: memref<128x128xbf16, #tpu.memory_space<vmem>>, %arg18: memref<1x128xf32, #tpu.memory_space<vmem>>, %arg19: memref<6x1x8x128xf32, #tpu.memory_space<any>>, %arg20: memref<8x8x128xf32, #tpu.memory_space<vmem>>, %arg21: memref<8x8x128xbf16, #tpu.memory_space<vmem>>, %arg22: memref<2x8x128xf32, #tpu.memory_space<vmem>>, %arg23: memref<2x!tpu.dma_semaphore, #tpu.memory_space<semaphore_mem>>) attributes {dimension_semantics = [#tpu.dimension_semantics<parallel>], iteration_bounds = array<i64: 1>, scalar_prefetch = 0 : i64, scratch_operands = 4 : i64, tpu.core_type = #tpu.core_type<tc>, window_params = [{transform_indices = @transform_0, window_bounds = array<i64: 8, 8, 128>}, {transform_indices = @transform_1, window_bounds = array<i64: 8, 8, 1>}, {transform_indices = @transform_2, window_bounds = array<i64: 8, 1, 8>}, {transform_indices = @transform_3, window_bounds = array<i64: 8, 128>}, {transform_indices = @transform_4, window_bounds = array<i64: 8, 128>}, {pipeline_mode = #tpu.pipeline_mode<synchronous>, transform_indices = @transform_5, window_bounds = array<i64: 128, 128>}, {pipeline_mode = #tpu.pipeline_mode<synchronous>, transform_indices = @transform_6, window_bounds = array<i64: 128, 512>}, {pipeline_mode = #tpu.pipeline_mode<synchronous>, transform_indices = @transform_7, window_bounds = array<i64: 128, 512>}, {pipeline_mode = #tpu.pipeline_mode<synchronous>, transform_indices = @transform_8, window_bounds = array<i64: 1, 512>}, {pipeline_mode = #tpu.pipeline_mode<synchronous>, transform_indices = @transform_9, window_bounds = array<i64: 128, 512>}, {pipeline_mode = #tpu.pipeline_mode<synchronous>, transform_indices = @transform_10, window_bounds = array<i64: 128, 512>}, {pipeline_mode = #tpu.pipeline_mode<synchronous>, transform_indices = @transform_11, window_bounds = array<i64: 128, 512>}, {pipeline_mode = #tpu.pipeline_mode<synchronous>, transform_indices = @transform_12, window_bounds = array<i64: 1, 512>}, {pipeline_mode = #tpu.pipeline_mode<synchronous>, transform_indices = @transform_13, window_bounds = array<i64: 128, 128>}, {pipeline_mode = #tpu.pipeline_mode<synchronous>, transform_indices = @transform_14, window_bounds = array<i64: 128, 128>}, {pipeline_mode = #tpu.pipeline_mode<synchronous>, transform_indices = @transform_15, window_bounds = array<i64: 1, 128>}, {pipeline_mode = #tpu.pipeline_mode<synchronous>, transform_indices = @transform_16, window_bounds = array<i64: 128, 128>}, {pipeline_mode = #tpu.pipeline_mode<synchronous>, transform_indices = @transform_17, window_bounds = array<i64: 1, 128>}, {}]} {
    %c0 = arith.constant 0 : index
    %c0_0 = arith.constant 0 : index
    %0 = vector.load %arg9[%c0, %c0_0] : memref<1x512xf32, #tpu.memory_space<vmem>>, vector<1x512xf32>
    %1 = vector.shape_cast %0 : vector<1x512xf32> to vector<1x512xf32>
    %2 = vector.broadcast %1 : vector<1x512xf32> to vector<8x512xf32>
    %cst = arith.constant 0.000000e+00 : f32
    %3 = vector.broadcast %cst : f32 to vector<8x128xf32>
    %cst_1 = arith.constant 0.000000e+00 : f32
    %4 = vector.broadcast %cst_1 : f32 to vector<8x128xf32>
    %c0_i32 = arith.constant 0 : i32
    %c8_i32 = arith.constant 8 : i32
    %5 = arith.addi %c0_i32, %c8_i32 : i32
    %c1_i32 = arith.constant 1 : i32
    %6:2 = scf.for %arg24 = %c0_i32 to %5 step %c1_i32 iter_args(%arg25 = %3, %arg26 = %4) -> (vector<8x128xf32>, vector<8x128xf32>)  : i32 {
      %42 = arith.index_cast %arg24 : i32 to index
      %c0_40 = arith.constant 0 : index
      %c0_41 = arith.constant 0 : index
      %43 = vector.load %arg1[%42, %c0_40, %c0_41] : memref<8x8x128xf32, #tpu.memory_space<vmem>>, vector<1x8x128xf32>
      %44 = vector.shape_cast %43 : vector<1x8x128xf32> to vector<8x128xf32>
      %45 = arith.truncf %44 : vector<8x128xf32> to vector<8x128xbf16>
      %46 = arith.index_cast %arg24 : i32 to index
      %c0_42 = arith.constant 0 : index
      %c0_43 = arith.constant 0 : index
      %47 = vector.load %arg2[%46, %c0_42, %c0_43] : memref<8x8x1xf32, #tpu.memory_space<vmem>>, vector<1x8x1xf32>
      %48 = vector.shape_cast %47 : vector<1x8x1xf32> to vector<8x1xf32>
      %c0_44 = arith.constant 0 : index
      %c0_45 = arith.constant 0 : index
      %49 = vector.load %arg7[%c0_44, %c0_45] : memref<128x512xbf16, #tpu.memory_space<vmem>>, vector<128x512xbf16>
      %cst_46 = arith.constant dense<0.000000e+00> : vector<8x512xf32>
      %50 = tpu.matmul %45, %49, %cst_46 {dimension_numbers = #tpu.dot_dimension_numbers<[1], [0], [0], [1], [0, 0, 1, 1], [], []>} : vector<8x128xbf16>, vector<128x512xbf16>, vector<8x512xf32> -> vector<8x512xf32>
      %51 = arith.truncf %arg25 : vector<8x128xf32> to vector<8x128xbf16>
      %c0_47 = arith.constant 0 : index
      %c0_48 = arith.constant 0 : index
      %52 = vector.load %arg8[%c0_47, %c0_48] : memref<128x512xbf16, #tpu.memory_space<vmem>>, vector<128x512xbf16>
      %cst_49 = arith.constant dense<0.000000e+00> : vector<8x512xf32>
      %53 = tpu.matmul %51, %52, %cst_49 {dimension_numbers = #tpu.dot_dimension_numbers<[1], [0], [0], [1], [0, 0, 1, 1], [], []>} : vector<8x128xbf16>, vector<128x512xbf16>, vector<8x512xf32> -> vector<8x512xf32>
      %54 = arith.addf %50, %53 : vector<8x512xf32>
      %55 = arith.addf %54, %2 : vector<8x512xf32>
      %56 = vector.extract_strided_slice %55 {offsets = [0, 0], sizes = [8, 128], strides = [1, 1]} : vector<8x512xf32> to vector<8x128xf32>
      %57 = arith.negf %56 : vector<8x128xf32>
      %58 = math.exp %57 : vector<8x128xf32>
      %cst_50 = arith.constant 1.000000e+00 : f32
      %59 = vector.broadcast %cst_50 : f32 to vector<8x128xf32>
      %60 = arith.addf %59, %58 : vector<8x128xf32>
      %61 = arith.divf %59, %60 : vector<8x128xf32>
      %62 = vector.extract_strided_slice %55 {offsets = [0, 128], sizes = [8, 128], strides = [1, 1]} : vector<8x512xf32> to vector<8x128xf32>
      %63 = arith.negf %62 : vector<8x128xf32>
      %64 = math.exp %63 : vector<8x128xf32>
      %cst_51 = arith.constant 1.000000e+00 : f32
      %65 = vector.broadcast %cst_51 : f32 to vector<8x128xf32>
      %66 = arith.addf %65, %64 : vector<8x128xf32>
      %67 = arith.divf %65, %66 : vector<8x128xf32>
      %68 = vector.extract_strided_slice %55 {offsets = [0, 256], sizes = [8, 128], strides = [1, 1]} : vector<8x512xf32> to vector<8x128xf32>
      %69 = math.tanh %68 : vector<8x128xf32>
      %70 = vector.extract_strided_slice %55 {offsets = [0, 384], sizes = [8, 128], strides = [1, 1]} : vector<8x512xf32> to vector<8x128xf32>
      %71 = arith.negf %70 : vector<8x128xf32>
      %72 = math.exp %71 : vector<8x128xf32>
      %cst_52 = arith.constant 1.000000e+00 : f32
      %73 = vector.broadcast %cst_52 : f32 to vector<8x128xf32>
      %74 = arith.addf %73, %72 : vector<8x128xf32>
      %75 = arith.divf %73, %74 : vector<8x128xf32>
      %76 = arith.mulf %67, %arg26 : vector<8x128xf32>
      %77 = arith.mulf %61, %69 : vector<8x128xf32>
      %78 = arith.addf %76, %77 : vector<8x128xf32>
      %79 = math.tanh %78 : vector<8x128xf32>
      %80 = arith.mulf %75, %79 : vector<8x128xf32>
      %81 = vector.broadcast %48 : vector<8x1xf32> to vector<8x128xf32>
      %82 = arith.mulf %81, %80 : vector<8x128xf32>
      %cst_53 = arith.constant 1.000000e+00 : f32
      %83 = vector.broadcast %cst_53 : f32 to vector<8x1xf32>
      %84 = arith.subf %83, %48 : vector<8x1xf32>
      %85 = vector.broadcast %84 : vector<8x1xf32> to vector<8x128xf32>
      %86 = arith.mulf %85, %arg25 : vector<8x128xf32>
      %87 = arith.addf %82, %86 : vector<8x128xf32>
      %88 = vector.broadcast %48 : vector<8x1xf32> to vector<8x128xf32>
      %89 = arith.mulf %88, %78 : vector<8x128xf32>
      %cst_54 = arith.constant 1.000000e+00 : f32
      %90 = vector.broadcast %cst_54 : f32 to vector<8x1xf32>
      %91 = arith.subf %90, %48 : vector<8x1xf32>
      %92 = vector.broadcast %91 : vector<8x1xf32> to vector<8x128xf32>
      %93 = arith.mulf %92, %arg26 : vector<8x128xf32>
      %94 = arith.addf %89, %93 : vector<8x128xf32>
      %95 = vector.broadcast %48 : vector<8x1xf32> to vector<8x128xf32>
      %96 = arith.mulf %95, %80 : vector<8x128xf32>
      %97 = arith.index_cast %arg24 : i32 to index
      %c0_55 = arith.constant 0 : index
      %c0_56 = arith.constant 0 : index
      %98 = vector.load %arg20[%97, %c0_55, %c0_56] : memref<8x8x128xf32, #tpu.memory_space<vmem>>, vector<1x8x128xf32>
      %99 = vector.shape_cast %98 : vector<1x8x128xf32> to vector<8x128xf32>
      %100 = vector.shape_cast %96 : vector<8x128xf32> to vector<1x8x128xf32>
      tpu.vector_store %arg20[%97, %c0_55, %c0_56], %100 {strides = array<i32>} : memref<8x8x128xf32, #tpu.memory_space<vmem>>, vector<1x8x128xf32>,
      scf.yield %87, %94 : vector<8x128xf32>, vector<8x128xf32>
    }
    %c8_i32_2 = arith.constant 8 : i32
    %c0_3 = arith.constant 0 : index
    %c0_4 = arith.constant 0 : index
    %c0_5 = arith.constant 0 : index
    %7 = vector.load %arg20[%c0_3, %c0_4, %c0_5] : memref<8x8x128xf32, #tpu.memory_space<vmem>>, vector<8x8x128xf32>
    %8 = tpu.transpose %7, [1, 0, 2] : vector<8x8x128xf32> -> vector<8x8x128xf32>
    %9 = arith.truncf %8 : vector<8x8x128xf32> to vector<8x8x128xbf16>
    %c0_6 = arith.constant 0 : index
    %c0_7 = arith.constant 0 : index
    %c0_8 = arith.constant 0 : index
    %10 = vector.load %arg21[%c0_6, %c0_7, %c0_8] : memref<8x8x128xbf16, #tpu.memory_space<vmem>>, vector<8x8x128xbf16>
    tpu.vector_store %arg21[%c0_6, %c0_7, %c0_8], %9 {strides = array<i32>} : memref<8x8x128xbf16, #tpu.memory_space<vmem>>, vector<8x8x128xbf16>,
    %c0_9 = arith.constant 0 : index
    %c0_10 = arith.constant 0 : index
    %c0_11 = arith.constant 0 : index
    %11 = vector.load %arg3[%c0_9, %c0_10, %c0_11] : memref<8x1x8xf32, #tpu.memory_space<vmem>>, vector<8x1x8xf32>
    %c0_12 = arith.constant 0 : index
    %c0_13 = arith.constant 0 : index
    %12 = vector.load %arg4[%c0_12, %c0_13] : memref<8x128xf32, #tpu.memory_space<vmem>>, vector<8x128xf32>
    %13 = arith.truncf %12 : vector<8x128xf32> to vector<8x128xbf16>
    %c0_14 = arith.constant 0 : index
    %c0_15 = arith.constant 0 : index
    %14 = vector.load %arg11[%c0_14, %c0_15] : memref<128x512xbf16, #tpu.memory_space<vmem>>, vector<128x512xbf16>
    %cst_16 = arith.constant dense<0.000000e+00> : vector<8x512xf32>
    %15 = tpu.matmul %13, %14, %cst_16 {dimension_numbers = #tpu.dot_dimension_numbers<[1], [0], [0], [1], [0, 0, 1, 1], [], []>} : vector<8x128xbf16>, vector<128x512xbf16>, vector<8x512xf32> -> vector<8x512xf32>
    %c0_17 = arith.constant 0 : index
    %c0_18 = arith.constant 0 : index
    %16 = vector.load %arg13[%c0_17, %c0_18] : memref<1x512xf32, #tpu.memory_space<vmem>>, vector<1x512xf32>
    %17 = vector.shape_cast %16 : vector<1x512xf32> to vector<1x512xf32>
    %18 = vector.broadcast %17 : vector<1x512xf32> to vector<8x512xf32>
    %19 = arith.addf %15, %18 : vector<8x512xf32>
    %c0_19 = arith.constant 0 : index
    %c0_20 = arith.constant 0 : index
    %20 = vector.load %arg16[%c0_19, %c0_20] : memref<1x128xf32, #tpu.memory_space<vmem>>, vector<1x128xf32>
    %21 = vector.shape_cast %20 : vector<1x128xf32> to vector<1x128xf32>
    %22 = vector.broadcast %21 : vector<1x128xf32> to vector<8x128xf32>
    %c0_21 = arith.constant 0 : index
    %c0_22 = arith.constant 0 : index
    %23 = vector.load %arg18[%c0_21, %c0_22] : memref<1x128xf32, #tpu.memory_space<vmem>>, vector<1x128xf32>
    %24 = vector.shape_cast %23 : vector<1x128xf32> to vector<1x128xf32>
    %25 = vector.broadcast %24 : vector<1x128xf32> to vector<8x128xf32>
    %26 = tpu.iota {dimensions = array<i32: 1>} : vector<8x128xi32>
    %c0_23 = arith.constant 0 : index
    %c0_24 = arith.constant 0 : index
    %27 = vector.load %arg5[%c0_23, %c0_24] : memref<8x128xf32, #tpu.memory_space<vmem>>, vector<8x128xf32>
    %c0_i32_25 = arith.constant 0 : i32
    %c6_i32 = arith.constant 6 : i32
    %28 = arith.addi %c0_i32_25, %c6_i32 : i32
    %c1_i32_26 = arith.constant 1 : i32
    %29:3 = scf.for %arg24 = %c0_i32_25 to %28 step %c1_i32_26 iter_args(%arg25 = %6#0, %arg26 = %6#1, %arg27 = %27) -> (vector<8x128xf32>, vector<8x128xf32>, vector<8x128xf32>)  : i32 {
      %c2_i32 = arith.constant 2 : i32
      %c0_i32_40 = arith.constant 0 : i32
      %42 = arith.cmpi eq, %c2_i32, %c0_i32_40 : i32
      %c1_i32_41 = arith.constant 1 : i32
      %43 = arith.select %42, %c1_i32_41, %c2_i32 : i32
      %44 = arith.remsi %arg24, %43 : i32
      %c0_i32_42 = arith.constant 0 : i32
      %45 = arith.cmpi ne, %44, %c0_i32_42 : i32
      %c0_i32_43 = arith.constant 0 : i32
      %46 = arith.cmpi slt, %44, %c0_i32_43 : i32
      %c0_i32_44 = arith.constant 0 : i32
      %47 = arith.cmpi slt, %43, %c0_i32_44 : i32
      %48 = arith.xori %46, %47 : i1
      %49 = arith.andi %48, %45 : i1
      %50 = arith.addi %44, %43 : i32
      %51 = arith.select %49, %50, %44 : i32
      %52 = arith.truncf %arg27 : vector<8x128xf32> to vector<8x128xbf16>
      %c0_45 = arith.constant 0 : index
      %c0_46 = arith.constant 0 : index
      %53 = vector.load %arg10[%c0_45, %c0_46] : memref<128x512xbf16, #tpu.memory_space<vmem>>, vector<128x512xbf16>
      %cst_47 = arith.constant dense<0.000000e+00> : vector<8x512xf32>
      %54 = tpu.matmul %52, %53, %cst_47 {dimension_numbers = #tpu.dot_dimension_numbers<[1], [0], [0], [1], [0, 0, 1, 1], [], []>} : vector<8x128xbf16>, vector<128x512xbf16>, vector<8x512xf32> -> vector<8x512xf32>
      %55 = arith.truncf %arg25 : vector<8x128xf32> to vector<8x128xbf16>
      %c0_48 = arith.constant 0 : index
      %c0_49 = arith.constant 0 : index
      %56 = vector.load %arg12[%c0_48, %c0_49] : memref<128x512xbf16, #tpu.memory_space<vmem>>, vector<128x512xbf16>
      %cst_50 = arith.constant dense<0.000000e+00> : vector<8x512xf32>
      %57 = tpu.matmul %55, %56, %cst_50 {dimension_numbers = #tpu.dot_dimension_numbers<[1], [0], [0], [1], [0, 0, 1, 1], [], []>} : vector<8x128xbf16>, vector<128x512xbf16>, vector<8x512xf32> -> vector<8x512xf32>
      %58 = arith.addf %54, %57 : vector<8x512xf32>
      %59 = arith.addf %58, %19 : vector<8x512xf32>
      %60 = vector.extract_strided_slice %59 {offsets = [0, 0], sizes = [8, 128], strides = [1, 1]} : vector<8x512xf32> to vector<8x128xf32>
      %61 = arith.negf %60 : vector<8x128xf32>
      %62 = math.exp %61 : vector<8x128xf32>
      %cst_51 = arith.constant 1.000000e+00 : f32
      %63 = vector.broadcast %cst_51 : f32 to vector<8x128xf32>
      %64 = arith.addf %63, %62 : vector<8x128xf32>
      %65 = arith.divf %63, %64 : vector<8x128xf32>
      %66 = vector.extract_strided_slice %59 {offsets = [0, 128], sizes = [8, 128], strides = [1, 1]} : vector<8x512xf32> to vector<8x128xf32>
      %67 = arith.negf %66 : vector<8x128xf32>
      %68 = math.exp %67 : vector<8x128xf32>
      %cst_52 = arith.constant 1.000000e+00 : f32
      %69 = vector.broadcast %cst_52 : f32 to vector<8x128xf32>
      %70 = arith.addf %69, %68 : vector<8x128xf32>
      %71 = arith.divf %69, %70 : vector<8x128xf32>
      %72 = vector.extract_strided_slice %59 {offsets = [0, 256], sizes = [8, 128], strides = [1, 1]} : vector<8x512xf32> to vector<8x128xf32>
      %73 = math.tanh %72 : vector<8x128xf32>
      %74 = vector.extract_strided_slice %59 {offsets = [0, 384], sizes = [8, 128], strides = [1, 1]} : vector<8x512xf32> to vector<8x128xf32>
      %75 = arith.negf %74 : vector<8x128xf32>
      %76 = math.exp %75 : vector<8x128xf32>
      %cst_53 = arith.constant 1.000000e+00 : f32
      %77 = vector.broadcast %cst_53 : f32 to vector<8x128xf32>
      %78 = arith.addf %77, %76 : vector<8x128xf32>
      %79 = arith.divf %77, %78 : vector<8x128xf32>
      %80 = arith.mulf %71, %arg26 : vector<8x128xf32>
      %81 = arith.mulf %65, %73 : vector<8x128xf32>
      %82 = arith.addf %80, %81 : vector<8x128xf32>
      %83 = math.tanh %82 : vector<8x128xf32>
      %84 = arith.mulf %79, %83 : vector<8x128xf32>
      %c0_54 = arith.constant 0 : index
      %c0_55 = arith.constant 0 : index
      %c0_56 = arith.constant 0 : index
      %85 = vector.load %arg21[%c0_54, %c0_55, %c0_56] : memref<8x8x128xbf16, #tpu.memory_space<vmem>>, vector<8x8x128xbf16>
      %86 = vector.shape_cast %84 : vector<8x128xf32> to vector<8x1x128xf32>
      %87 = arith.truncf %86 : vector<8x1x128xf32> to vector<8x1x128xbf16>
      "tpu.trace_start"() <{level = 10 : i32, message = "bqh,bth->bqt"}> : () -> ()
      %cst_57 = arith.constant dense<0.000000e+00> : vector<8x1x8xf32>
      %88 = tpu.matmul %87, %85, %cst_57 {dimension_numbers = #tpu.dot_dimension_numbers<[2], [2], [1], [1], [0, 0, 0, 1, 1, 1], [0], [0]>} : vector<8x1x128xbf16>, vector<8x8x128xbf16>, vector<8x1x8xf32> -> vector<8x1x8xf32>
      "tpu.trace_stop"() : () -> ()
      %89 = arith.addf %88, %11 : vector<8x1x8xf32>
      %cst_58 = arith.constant dense<0xFF800000> : vector<8x1xf32>
      %90 = vector.multi_reduction <maximumf>, %89, %cst_58 [2] : vector<8x1x8xf32> to vector<8x1xf32>
      %91 = vector.shape_cast %90 : vector<8x1xf32> to vector<8x1x1xf32>
      %92 = vector.broadcast %91 : vector<8x1x1xf32> to vector<8x1x8xf32>
      %93 = arith.subf %89, %92 : vector<8x1x8xf32>
      %94 = math.exp %93 : vector<8x1x8xf32>
      %cst_59 = arith.constant dense<0.000000e+00> : vector<8x1xf32>
      %95 = vector.multi_reduction <add>, %94, %cst_59 [2] : vector<8x1x8xf32> to vector<8x1xf32>
      %96 = vector.shape_cast %95 : vector<8x1xf32> to vector<8x1x1xf32>
      %97 = tpu.reciprocal %96 {approx = true} : vector<8x1x1xf32> -> vector<8x1x1xf32>
      %98 = vector.broadcast %97 : vector<8x1x1xf32> to vector<8x1x8xf32>
      %99 = arith.mulf %94, %98 : vector<8x1x8xf32>
      %100 = arith.truncf %99 : vector<8x1x8xf32> to vector<8x1x8xbf16>
      "tpu.trace_start"() <{level = 10 : i32, message = "bqt,bth->bqh"}> : () -> ()
      %cst_60 = arith.constant dense<0.000000e+00> : vector<8x1x128xf32>
      %101 = tpu.matmul %100, %85, %cst_60 {dimension_numbers = #tpu.dot_dimension_numbers<[2], [1], [1], [2], [0, 0, 0, 1, 1, 2], [0], [0]>} : vector<8x1x8xbf16>, vector<8x8x128xbf16>, vector<8x1x128xf32> -> vector<8x1x128xf32>
      "tpu.trace_stop"() : () -> ()
      %102 = vector.shape_cast %101 : vector<8x1x128xf32> to vector<8x128xf32>
      %103 = arith.truncf %84 : vector<8x128xf32> to vector<8x128xbf16>
      %c0_61 = arith.constant 0 : index
      %c0_62 = arith.constant 0 : index
      %104 = vector.load %arg14[%c0_61, %c0_62] : memref<128x128xbf16, #tpu.memory_space<vmem>>, vector<128x128xbf16>
      %cst_63 = arith.constant dense<0.000000e+00> : vector<8x128xf32>
      %105 = tpu.matmul %103, %104, %cst_63 {dimension_numbers = #tpu.dot_dimension_numbers<[1], [0], [0], [1], [0, 0, 1, 1], [], []>} : vector<8x128xbf16>, vector<128x128xbf16>, vector<8x128xf32> -> vector<8x128xf32>
      %106 = arith.truncf %102 : vector<8x128xf32> to vector<8x128xbf16>
      %c0_64 = arith.constant 0 : index
      %c0_65 = arith.constant 0 : index
      %107 = vector.load %arg15[%c0_64, %c0_65] : memref<128x128xbf16, #tpu.memory_space<vmem>>, vector<128x128xbf16>
      %cst_66 = arith.constant dense<0.000000e+00> : vector<8x128xf32>
      %108 = tpu.matmul %106, %107, %cst_66 {dimension_numbers = #tpu.dot_dimension_numbers<[1], [0], [0], [1], [0, 0, 1, 1], [], []>} : vector<8x128xbf16>, vector<128x128xbf16>, vector<8x128xf32> -> vector<8x128xf32>
      %109 = arith.addf %105, %108 : vector<8x128xf32>
      %110 = arith.addf %109, %22 : vector<8x128xf32>
      %111 = math.tanh %110 : vector<8x128xf32>
      %112 = arith.truncf %111 : vector<8x128xf32> to vector<8x128xbf16>
      %c0_67 = arith.constant 0 : index
      %c0_68 = arith.constant 0 : index
      %113 = vector.load %arg17[%c0_67, %c0_68] : memref<128x128xbf16, #tpu.memory_space<vmem>>, vector<128x128xbf16>
      %cst_69 = arith.constant dense<0.000000e+00> : vector<8x128xf32>
      %114 = tpu.matmul %112, %113, %cst_69 {dimension_numbers = #tpu.dot_dimension_numbers<[1], [0], [0], [1], [0, 0, 1, 1], [], []>} : vector<8x128xbf16>, vector<128x128xbf16>, vector<8x128xf32> -> vector<8x128xf32>
      %115 = arith.addf %114, %25 : vector<8x128xf32>
      %cst_70 = arith.constant dense<0xFF800000> : vector<8xf32>
      %116 = vector.multi_reduction <maximumf>, %115, %cst_70 [1] : vector<8x128xf32> to vector<8xf32>
      %117 = vector.shape_cast %116 : vector<8xf32> to vector<8x1xf32>
      %118 = vector.broadcast %117 : vector<8x1xf32> to vector<8x128xf32>
      %119 = arith.subf %115, %118 : vector<8x128xf32>
      %120 = math.exp %119 : vector<8x128xf32>
      %cst_71 = arith.constant dense<0.000000e+00> : vector<8xf32>
      %121 = vector.multi_reduction <add>, %120, %cst_71 [1] : vector<8x128xf32> to vector<8xf32>
      %122 = vector.shape_cast %121 : vector<8xf32> to vector<8x1xf32>
      %123 = vector.broadcast %122 : vector<8x1xf32> to vector<8x128xf32>
      %124 = arith.divf %120, %123 : vector<8x128xf32>
      %c2_i32_72 = arith.constant 2 : i32
      %125 = arith.cmpi sge, %arg24, %c2_i32_72 : i32
      %126 = arith.extui %125 : i1 to i32
      %c0_i32_73 = arith.constant 0 : i32
      %127 = arith.cmpi ne, %126, %c0_i32_73 : i32
      scf.if %127 {
        %c2_i32_84 = arith.constant 2 : i32
        %151 = arith.subi %arg24, %c2_i32_84 : i32
        %c0_i32_85 = arith.constant 0 : i32
        %c0_i32_86 = arith.constant 0 : i32
        %152 = tpu.memref_slice %arg22[%51, %c0_i32_85, %c0_i32_86] : memref<2x8x128xf32, #tpu.memory_space<vmem>> -> memref<1x8x128xf32, #tpu.memory_space<vmem>>
        %153 = tpu.memref_squeeze %152 : memref<1x8x128xf32, #tpu.memory_space<vmem>> -> memref<8x128xf32, #tpu.memory_space<vmem>>
        %c0_i32_87 = arith.constant 0 : i32
        %c0_i32_88 = arith.constant 0 : i32
        %154 = tpu.memref_slice %arg19[%151, %arg0, %c0_i32_87, %c0_i32_88] : memref<6x1x8x128xf32, #tpu.memory_space<any>> -> memref<1x1x8x128xf32, #tpu.memory_space<any>>
        %155 = tpu.memref_squeeze %154 : memref<1x1x8x128xf32, #tpu.memory_space<any>> -> memref<8x128xf32, #tpu.memory_space<any>>
        %156 = tpu.memref_slice %arg23[%51] : memref<2x!tpu.dma_semaphore, #tpu.memory_space<semaphore_mem>> -> memref<1x!tpu.dma_semaphore, #tpu.memory_space<semaphore_mem>>
        %157 = tpu.memref_squeeze %156 : memref<1x!tpu.dma_semaphore, #tpu.memory_space<semaphore_mem>> -> memref<!tpu.dma_semaphore, #tpu.memory_space<semaphore_mem>>
        tpu.wait_dma2 semaphore(%157 : memref<!tpu.dma_semaphore, #tpu.memory_space<semaphore_mem>>) src(%153 : memref<8x128xf32, #tpu.memory_space<vmem>>) dst(%155 : memref<8x128xf32, #tpu.memory_space<any>>)
      } else {
      }
      %128 = arith.index_cast %51 : i32 to index
      %c0_74 = arith.constant 0 : index
      %c0_75 = arith.constant 0 : index
      %129 = vector.load %arg22[%128, %c0_74, %c0_75] : memref<2x8x128xf32, #tpu.memory_space<vmem>>, vector<1x8x128xf32>
      %130 = vector.shape_cast %129 : vector<1x8x128xf32> to vector<8x128xf32>
      %131 = vector.shape_cast %124 : vector<8x128xf32> to vector<1x8x128xf32>
      tpu.vector_store %arg22[%128, %c0_74, %c0_75], %131 {strides = array<i32>} : memref<2x8x128xf32, #tpu.memory_space<vmem>>, vector<1x8x128xf32>,
      %c0_i32_76 = arith.constant 0 : i32
      %c0_i32_77 = arith.constant 0 : i32
      %132 = tpu.memref_slice %arg22[%51, %c0_i32_76, %c0_i32_77] : memref<2x8x128xf32, #tpu.memory_space<vmem>> -> memref<1x8x128xf32, #tpu.memory_space<vmem>>
      %133 = tpu.memref_squeeze %132 : memref<1x8x128xf32, #tpu.memory_space<vmem>> -> memref<8x128xf32, #tpu.memory_space<vmem>>
      %c0_i32_78 = arith.constant 0 : i32
      %c0_i32_79 = arith.constant 0 : i32
      %134 = tpu.memref_slice %arg19[%arg24, %arg0, %c0_i32_78, %c0_i32_79] : memref<6x1x8x128xf32, #tpu.memory_space<any>> -> memref<1x1x8x128xf32, #tpu.memory_space<any>>
      %135 = tpu.memref_squeeze %134 : memref<1x1x8x128xf32, #tpu.memory_space<any>> -> memref<8x128xf32, #tpu.memory_space<any>>
      %136 = tpu.memref_slice %arg23[%51] : memref<2x!tpu.dma_semaphore, #tpu.memory_space<semaphore_mem>> -> memref<1x!tpu.dma_semaphore, #tpu.memory_space<semaphore_mem>>
      %137 = tpu.memref_squeeze %136 : memref<1x!tpu.dma_semaphore, #tpu.memory_space<semaphore_mem>> -> memref<!tpu.dma_semaphore, #tpu.memory_space<semaphore_mem>>
      tpu.enqueue_dma source(%133 : memref<8x128xf32, #tpu.memory_space<vmem>>) target(%135 : memref<8x128xf32, #tpu.memory_space<any>>) target_semaphore(%137 : memref<!tpu.dma_semaphore, #tpu.memory_space<semaphore_mem>>)
      %138 = vector.broadcast %117 : vector<8x1xf32> to vector<8x128xf32>
      %139 = arith.cmpf oge, %115, %138 : vector<8x128xf32>
      %c128_i32 = arith.constant 128 : i32
      %140 = vector.broadcast %c128_i32 : i32 to vector<8x128xi32>
      %141 = arith.select %139, %26, %140 : vector<8x128xi1>, vector<8x128xi32>
      %cst_80 = arith.constant dense<2147483647> : vector<8xi32>
      %142 = vector.multi_reduction <minsi>, %141, %cst_80 [1] : vector<8x128xi32> to vector<8xi32>
      %143 = vector.shape_cast %142 : vector<8xi32> to vector<8x1xi32>
      %144 = vector.broadcast %143 : vector<8x1xi32> to vector<8x128xi32>
      %145 = arith.cmpi eq, %26, %144 : vector<8x128xi32>
      %146 = arith.extui %145 : vector<8x128xi1> to vector<8x128xi32>
      %147 = arith.sitofp %146 : vector<8x128xi32> to vector<8x128xf32>
      %148 = arith.truncf %147 : vector<8x128xf32> to vector<8x128xbf16>
      %c0_81 = arith.constant 0 : index
      %c0_82 = arith.constant 0 : index
      %149 = vector.load %arg6[%c0_81, %c0_82] : memref<128x128xbf16, #tpu.memory_space<vmem>>, vector<128x128xbf16>
      %cst_83 = arith.constant dense<0.000000e+00> : vector<8x128xf32>
      %150 = tpu.matmul %148, %149, %cst_83 {dimension_numbers = #tpu.dot_dimension_numbers<[1], [0], [0], [1], [0, 0, 1, 1], [], []>} : vector<8x128xbf16>, vector<128x128xbf16>, vector<8x128xf32> -> vector<8x128xf32>
      scf.yield %84, %82, %150 : vector<8x128xf32>, vector<8x128xf32>, vector<8x128xf32>
    }
    %c6_i32_27 = arith.constant 6 : i32
    %c1_i32_28 = arith.constant 1 : i32
    %c5_i32 = arith.constant 5 : i32
    %c1_i32_29 = arith.constant 1 : i32
    %c0_i32_30 = arith.constant 0 : i32
    %c0_i32_31 = arith.constant 0 : i32
    %30 = tpu.memref_slice %arg22[%c1_i32_28, %c0_i32_30, %c0_i32_31] : memref<2x8x128xf32, #tpu.memory_space<vmem>> -> memref<1x8x128xf32, #tpu.memory_space<vmem>>
    %31 = tpu.memref_squeeze %30 : memref<1x8x128xf32, #tpu.memory_space<vmem>> -> memref<8x128xf32, #tpu.memory_space<vmem>>
    %c0_i32_32 = arith.constant 0 : i32
    %c0_i32_33 = arith.constant 0 : i32
    %32 = tpu.memref_slice %arg19[%c5_i32, %arg0, %c0_i32_32, %c0_i32_33] : memref<6x1x8x128xf32, #tpu.memory_space<any>> -> memref<1x1x8x128xf32, #tpu.memory_space<any>>
    %33 = tpu.memref_squeeze %32 : memref<1x1x8x128xf32, #tpu.memory_space<any>> -> memref<8x128xf32, #tpu.memory_space<any>>
    %34 = tpu.memref_slice %arg23[%c1_i32_29] : memref<2x!tpu.dma_semaphore, #tpu.memory_space<semaphore_mem>> -> memref<1x!tpu.dma_semaphore, #tpu.memory_space<semaphore_mem>>
    %35 = tpu.memref_squeeze %34 : memref<1x!tpu.dma_semaphore, #tpu.memory_space<semaphore_mem>> -> memref<!tpu.dma_semaphore, #tpu.memory_space<semaphore_mem>>
    tpu.wait_dma2 semaphore(%35 : memref<!tpu.dma_semaphore, #tpu.memory_space<semaphore_mem>>) src(%31 : memref<8x128xf32, #tpu.memory_space<vmem>>) dst(%33 : memref<8x128xf32, #tpu.memory_space<any>>)
    %c0_i32_34 = arith.constant 0 : i32
    %c4_i32 = arith.constant 4 : i32
    %c0_i32_35 = arith.constant 0 : i32
    %c0_i32_36 = arith.constant 0 : i32
    %c0_i32_37 = arith.constant 0 : i32
    %36 = tpu.memref_slice %arg22[%c0_i32_34, %c0_i32_36, %c0_i32_37] : memref<2x8x128xf32, #tpu.memory_space<vmem>> -> memref<1x8x128xf32, #tpu.memory_space<vmem>>
    %37 = tpu.memref_squeeze %36 : memref<1x8x128xf32, #tpu.memory_space<vmem>> -> memref<8x128xf32, #tpu.memory_space<vmem>>
    %c0_i32_38 = arith.constant 0 : i32
    %c0_i32_39 = arith.constant 0 : i32
    %38 = tpu.memref_slice %arg19[%c4_i32, %arg0, %c0_i32_38, %c0_i32_39] : memref<6x1x8x128xf32, #tpu.memory_space<any>> -> memref<1x1x8x128xf32, #tpu.memory_space<any>>
    %39 = tpu.memref_squeeze %38 : memref<1x1x8x128xf32, #tpu.memory_space<any>> -> memref<8x128xf32, #tpu.memory_space<any>>
    %40 = tpu.memref_slice %arg23[%c0_i32_35] : memref<2x!tpu.dma_semaphore, #tpu.memory_space<semaphore_mem>> -> memref<1x!tpu.dma_semaphore, #tpu.memory_space<semaphore_mem>>
    %41 = tpu.memref_squeeze %40 : memref<1x!tpu.dma_semaphore, #tpu.memory_space<semaphore_mem>> -> memref<!tpu.dma_semaphore, #tpu.memory_space<semaphore_mem>>
    tpu.wait_dma2 semaphore(%41 : memref<!tpu.dma_semaphore, #tpu.memory_space<semaphore_mem>>) src(%37 : memref<8x128xf32, #tpu.memory_space<vmem>>) dst(%39 : memref<8x128xf32, #tpu.memory_space<any>>)
    return
  }
  func.func @transform_0(%arg0: i32) -> (i32, i32, i32) {
    %c0_i32 = arith.constant 0 : i32
    %c0_i32_0 = arith.constant 0 : i32
    %c0_i32_1 = arith.constant 0 : i32
    return %c0_i32, %arg0, %c0_i32_0 : i32, i32, i32
  }
  func.func @transform_1(%arg0: i32) -> (i32, i32, i32) {
    %c0_i32 = arith.constant 0 : i32
    %c0_i32_0 = arith.constant 0 : i32
    %c0_i32_1 = arith.constant 0 : i32
    return %c0_i32, %arg0, %c0_i32_0 : i32, i32, i32
  }
  func.func @transform_2(%arg0: i32) -> (i32, i32, i32) {
    %c0_i32 = arith.constant 0 : i32
    %c0_i32_0 = arith.constant 0 : i32
    %c0_i32_1 = arith.constant 0 : i32
    return %arg0, %c0_i32, %c0_i32_0 : i32, i32, i32
  }
  func.func @transform_3(%arg0: i32) -> (i32, i32) {
    %c0_i32 = arith.constant 0 : i32
    %c0_i32_0 = arith.constant 0 : i32
    return %arg0, %c0_i32 : i32, i32
  }
  func.func @transform_4(%arg0: i32) -> (i32, i32) {
    %c0_i32 = arith.constant 0 : i32
    %c0_i32_0 = arith.constant 0 : i32
    return %arg0, %c0_i32 : i32, i32
  }
  func.func @transform_5(%arg0: i32) -> (i32, i32) {
    %c0_i32 = arith.constant 0 : i32
    %c0_i32_0 = arith.constant 0 : i32
    %c0_i32_1 = arith.constant 0 : i32
    return %c0_i32, %c0_i32_0 : i32, i32
  }
  func.func @transform_6(%arg0: i32) -> (i32, i32) {
    %c0_i32 = arith.constant 0 : i32
    %c0_i32_0 = arith.constant 0 : i32
    %c0_i32_1 = arith.constant 0 : i32
    return %c0_i32, %c0_i32_0 : i32, i32
  }
  func.func @transform_7(%arg0: i32) -> (i32, i32) {
    %c0_i32 = arith.constant 0 : i32
    %c0_i32_0 = arith.constant 0 : i32
    %c0_i32_1 = arith.constant 0 : i32
    return %c0_i32, %c0_i32_0 : i32, i32
  }
  func.func @transform_8(%arg0: i32) -> (i32, i32) {
    %c0_i32 = arith.constant 0 : i32
    %c0_i32_0 = arith.constant 0 : i32
    %c0_i32_1 = arith.constant 0 : i32
    return %c0_i32, %c0_i32_0 : i32, i32
  }
  func.func @transform_9(%arg0: i32) -> (i32, i32) {
    %c0_i32 = arith.constant 0 : i32
    %c0_i32_0 = arith.constant 0 : i32
    %c0_i32_1 = arith.constant 0 : i32
    return %c0_i32, %c0_i32_0 : i32, i32
  }
  func.func @transform_10(%arg0: i32) -> (i32, i32) {
    %c0_i32 = arith.constant 0 : i32
    %c0_i32_0 = arith.constant 0 : i32
    %c0_i32_1 = arith.constant 0 : i32
    return %c0_i32, %c0_i32_0 : i32, i32
  }
  func.func @transform_11(%arg0: i32) -> (i32, i32) {
    %c0_i32 = arith.constant 0 : i32
    %c0_i32_0 = arith.constant 0 : i32
    %c0_i32_1 = arith.constant 0 : i32
    return %c0_i32, %c0_i32_0 : i32, i32
  }
  func.func @transform_12(%arg0: i32) -> (i32, i32) {
    %c0_i32 = arith.constant 0 : i32
    %c0_i32_0 = arith.constant 0 : i32
    %c0_i32_1 = arith.constant 0 : i32
    return %c0_i32, %c0_i32_0 : i32, i32
  }
  func.func @transform_13(%arg0: i32) -> (i32, i32) {
    %c0_i32 = arith.constant 0 : i32
    %c0_i32_0 = arith.constant 0 : i32
    %c0_i32_1 = arith.constant 0 : i32
    return %c0_i32, %c0_i32_0 : i32, i32
  }
  func.func @transform_14(%arg0: i32) -> (i32, i32) {
    %c0_i32 = arith.constant 0 : i32
    %c0_i32_0 = arith.constant 0 : i32
    %c0_i32_1 = arith.constant 0 : i32
    return %c0_i32, %c0_i32_0 : i32, i32
  }
  func.func @transform_15(%arg0: i32) -> (i32, i32) {
    %c0_i32 = arith.constant 0 : i32
    %c0_i32_0 = arith.constant 0 : i32
    %c0_i32_1 = arith.constant 0 : i32
    return %c0_i32, %c0_i32_0 : i32, i32
  }
  func.func @transform_16(%arg0: i32) -> (i32, i32) {
    %c0_i32 = arith.constant 0 : i32
    %c0_i32_0 = arith.constant 0 : i32
    %c0_i32_1 = arith.constant 0 : i32
    return %c0_i32, %c0_i32_0 : i32, i32
  }
  func.func @transform_17(%arg0: i32) -> (i32, i32) {
    %c0_i32 = arith.constant 0 : i32
    %c0_i32_0 = arith.constant 0 : i32
    %c0_i32_1 = arith.constant 0 : i32
    return %c0_i32, %c0_i32_0 : i32, i32
  }
}

</mosaic_0001>

<llo_original>
// kernel: seq2seq_forward.1
$region0: #{seq2seq_forward.1}
  #allocation0 [shape = 'u32[]', space=smem, size = 0x4, offset = 0x4, fixed_abs, tag = 'smem constant byte address 0x4 - core index']
  #allocation1 [shape = 'u32[72,128]{1,0:T(1,128)}', space=vmem, size = 0x9000, scoped, tag = 'internal scratch']
  #allocation2 [shape = 'f32[8,8,128]{2,1,0:T(8,128)}', space=vmem, size = 0x8000, scoped, tag = 'scratch operand']
  #allocation3 [shape = 'bf16[8,8,128]{2,1,0:T(8,128)(2,1)}', space=vmem, size = 0x4000, scoped, tag = 'scratch operand']
  #allocation4 [shape = 'f32[2,8,128]{2,1,0:T(8,128)}', space=vmem, size = 0x2000, scoped, tag = 'scratch operand']
  #allocation5 [shape = 's32[2]{0}', space=sflag, size = 0x8, scoped, tag = 'scratch operand']
  #allocation6 [shape = 's32[]', space=sflag, size = 0x4, offset = 0, fixed_abs, tag = 'sflag constant byte address 0x0 - dummy sync flag']
  %s0 = inlined_call_operand.vmem [shape: f32[8,8,128], index: 0, kind: input, shape index: {}]
  %s1 = inlined_call_operand.vmem [shape: f32[8,8,1], index: 1, kind: input, shape index: {}]
  %s2 = inlined_call_operand.vmem [shape: f32[8,1,8], index: 2, kind: input, shape index: {}]
  %s3 = inlined_call_operand.vmem [shape: f32[8,128], index: 3, kind: input, shape index: {}]
  %s4 = inlined_call_operand.vmem [shape: f32[8,128], index: 4, kind: input, shape index: {}]
  %s5 = inlined_call_operand.vmem [shape: bf16[128,128], index: 5, kind: input, shape index: {}]
  %s6 = inlined_call_operand.vmem [shape: bf16[128,512], index: 6, kind: input, shape index: {}]
  %s7 = inlined_call_operand.vmem [shape: bf16[128,512], index: 7, kind: input, shape index: {}]
  %s8 = inlined_call_operand.vmem [shape: f32[1,512], index: 8, kind: input, shape index: {}]
  %s9 = inlined_call_operand.vmem [shape: bf16[128,512], index: 9, kind: input, shape index: {}]
  %s10 = inlined_call_operand.vmem [shape: bf16[128,512], index: 10, kind: input, shape index: {}]
  %s11 = inlined_call_operand.vmem [shape: bf16[128,512], index: 11, kind: input, shape index: {}]
  %s12 = inlined_call_operand.vmem [shape: f32[1,512], index: 12, kind: input, shape index: {}]
  %s13 = inlined_call_operand.vmem [shape: bf16[128,128], index: 13, kind: input, shape index: {}]
  %s14 = inlined_call_operand.vmem [shape: bf16[128,128], index: 14, kind: input, shape index: {}]
  %s15 = inlined_call_operand.vmem [shape: f32[1,128], index: 15, kind: input, shape index: {}]
  %s16 = inlined_call_operand.vmem [shape: bf16[128,128], index: 16, kind: input, shape index: {}]
  %s17 = inlined_call_operand.vmem [shape: f32[1,128], index: 17, kind: input, shape index: {}]
  %s18 = inlined_call_operand.vmem [shape: f32[6,1,8,128], index: 18, kind: output, shape index: {}]
  %s19 = sld [smem:[#allocation0]]
  $region126: #{seq2seq_forward.1} parent=0
    _
  %s21 = ssub.s32 1, %s19
  %s22 = scalar_select 0, %s21, %s19
  // Predicated region
  $region2: #{seq2seq_forward.1} parent=0 // pred_check
    _
  $region3: #{seq2seq_forward.1} parent=0 // pred_check_branch
    %24 = sbr.rel (0) target = $region5
  $region4: #{seq2seq_forward.1} parent=0 // pred_region
    _
  $region5: #{seq2seq_forward.1} parent=0 // pred_fallthru
    _
  // Predicated region
  $region6: #{seq2seq_forward.1} parent=0 // pred_check
    _
  $region7: #{seq2seq_forward.1} parent=0 // pred_check_branch
    %26 = sbr.rel (0) target = $region9
  $region8: #{seq2seq_forward.1} parent=0 // pred_region
    _
  $region9: #{seq2seq_forward.1} parent=0 // pred_fallthru
    _
  // Predicated region
  $region10: #{seq2seq_forward.1} parent=0 // pred_check
    _
  $region11: #{seq2seq_forward.1} parent=0 // pred_check_branch
    %28 = sbr.rel (0) target = $region13
  $region12: #{seq2seq_forward.1} parent=0 // pred_region
    _
  $region13: #{seq2seq_forward.1} parent=0 // pred_fallthru
    _
  // Predicated region
  $region14: #{seq2seq_forward.1} parent=0 // pred_check
    _
  $region15: #{seq2seq_forward.1} parent=0 // pred_check_branch
    %30 = sbr.rel (0) target = $region17
  $region16: #{seq2seq_forward.1} parent=0 // pred_region
    _
  $region17: #{seq2seq_forward.1} parent=0 // pred_fallthru
    _
  // Predicated region
  $region18: #{seq2seq_forward.1} parent=0 // pred_check
    _
  $region19: #{seq2seq_forward.1} parent=0 // pred_check_branch
    %32 = sbr.rel (0) target = $region21
  $region20: #{seq2seq_forward.1} parent=0 // pred_region
    _
  $region21: #{seq2seq_forward.1} parent=0 // pred_fallthru
    _
  // Predicated region
  $region22: #{seq2seq_forward.1} parent=0 // pred_check
    _
  $region23: #{seq2seq_forward.1} parent=0 // pred_check_branch
    %34 = sbr.rel (0) target = $region25
  $region24: #{seq2seq_forward.1} parent=0 // pred_region
    _
  $region25: #{seq2seq_forward.1} parent=0 // pred_fallthru
    _
  // Predicated region
  $region26: #{seq2seq_forward.1} parent=0 // pred_check
    _
  $region27: #{seq2seq_forward.1} parent=0 // pred_check_branch
    %36 = sbr.rel (0) target = $region29
  $region28: #{seq2seq_forward.1} parent=0 // pred_region
    _
  $region29: #{seq2seq_forward.1} parent=0 // pred_fallthru
    _
  // Predicated region
  $region30: #{seq2seq_forward.1} parent=0 // pred_check
    _
  $region31: #{seq2seq_forward.1} parent=0 // pred_check_branch
    %38 = sbr.rel (0) target = $region33
  $region32: #{seq2seq_forward.1} parent=0 // pred_region
    _
  $region33: #{seq2seq_forward.1} parent=0 // pred_fallthru
    _
  // Predicated region
  $region34: #{seq2seq_forward.1} parent=0 // pred_check
    _
  $region35: #{seq2seq_forward.1} parent=0 // pred_check_branch
    %40 = sbr.rel (0) target = $region37
  $region36: #{seq2seq_forward.1} parent=0 // pred_region
    _
  $region37: #{seq2seq_forward.1} parent=0 // pred_fallthru
    _
  // Predicated region
  $region38: #{seq2seq_forward.1} parent=0 // pred_check
    _
  $region39: #{seq2seq_forward.1} parent=0 // pred_check_branch
    %42 = sbr.rel (0) target = $region41
  $region40: #{seq2seq_forward.1} parent=0 // pred_region
    _
  $region41: #{seq2seq_forward.1} parent=0 // pred_fallthru
    _
  // Predicated region
  $region42: #{seq2seq_forward.1} parent=0 // pred_check
    _
  $region43: #{seq2seq_forward.1} parent=0 // pred_check_branch
    %44 = sbr.rel (0) target = $region45
  $region44: #{seq2seq_forward.1} parent=0 // pred_region
    _
  $region45: #{seq2seq_forward.1} parent=0 // pred_fallthru
    _
  // Predicated region
  $region46: #{seq2seq_forward.1} parent=0 // pred_check
    _
  $region47: #{seq2seq_forward.1} parent=0 // pred_check_branch
    %46 = sbr.rel (0) target = $region49
  $region48: #{seq2seq_forward.1} parent=0 // pred_region
    _
  $region49: #{seq2seq_forward.1} parent=0 // pred_fallthru
    _
  // Predicated region
  $region50: #{seq2seq_forward.1} parent=0 // pred_check
    _
  $region51: #{seq2seq_forward.1} parent=0 // pred_check_branch
    %48 = sbr.rel (0) target = $region53
  $region52: #{seq2seq_forward.1} parent=0 // pred_region
    _
  $region53: #{seq2seq_forward.1} parent=0 // pred_fallthru
    _
  // Predicated region
  $region54: #{seq2seq_forward.1} parent=0 // pred_check
    _
  $region55: #{seq2seq_forward.1} parent=0 // pred_check_branch
    %50 = sbr.rel (0) target = $region57
  $region56: #{seq2seq_forward.1} parent=0 // pred_region
    _
  $region57: #{seq2seq_forward.1} parent=0 // pred_fallthru
    _
  // Predicated region
  $region58: #{seq2seq_forward.1} parent=0 // pred_check
    _
  $region59: #{seq2seq_forward.1} parent=0 // pred_check_branch
    %52 = sbr.rel (0) target = $region61
  $region60: #{seq2seq_forward.1} parent=0 // pred_region
    _
  $region61: #{seq2seq_forward.1} parent=0 // pred_fallthru
    _
  // Predicated region
  $region62: #{seq2seq_forward.1} parent=0 // pred_check
    _
  $region63: #{seq2seq_forward.1} parent=0 // pred_check_branch
    %54 = sbr.rel (0) target = $region65
  $region64: #{seq2seq_forward.1} parent=0 // pred_region
    _
  $region65: #{seq2seq_forward.1} parent=0 // pred_fallthru
    _
  // Predicated region
  $region66: #{seq2seq_forward.1} parent=0 // pred_check
    _
  $region67: #{seq2seq_forward.1} parent=0 // pred_check_branch
    %56 = sbr.rel (0) target = $region69
  $region68: #{seq2seq_forward.1} parent=0 // pred_region
    _
  $region69: #{seq2seq_forward.1} parent=0 // pred_fallthru
    _
  // Predicated region
  $region70: #{seq2seq_forward.1} parent=0 // pred_check
    _
  $region71: #{seq2seq_forward.1} parent=0 // pred_check_branch
    %58 = sbr.rel (0) target = $region73
  $region72: #{seq2seq_forward.1} parent=0 // pred_region
    _
  $region73: #{seq2seq_forward.1} parent=0 // pred_fallthru
    _
  %v60 = vld [vmem:[%s8] sm:$0xf]
  %v62 = vperm.slane %v60, 0
  %v63 = vperm.slane %v60, 1
  %v64 = vperm.slane %v60, 2
  %v65 = vperm.slane %v60, 3
  loop: start=0, step=1, limit=8
  $region74: #{seq2seq_forward.1} parent=0 // loop_pre_header
    _
  $region75: #{seq2seq_forward.1} parent=0 // loop_header
    %s71 = sphi 0, %s75
    %p72 = scmp.ge.s32.totalorder %s71, 8
    %v76 = vphi 0.0, %v653
    %v77 = vphi 0.0, %v656
  $region76: #{seq2seq_forward.1} parent=0 // loop_header_branch
    %74 = sbr.rel (%p72) target = $region80
  $region77: #{seq2seq_forward.1} parent=0 // loop_body
    %s78 = smul.u32 %s71, 8
    %s79 = scalar_lea.vmem %s0, %s78
    %v80 = vld [vmem:[%s79] sm:$0xff]
    %v81 = vpack.c.bf16 %v80, %v80
    %s82 = scalar_lea.vmem %s1, %s78
    %v83 = vld [vmem:[%s82] sm:$0xff]
    %v84 = vld [vmem:[%s6] sm:$0xff]
    %v85 = vld [vmem:[%s6 + $0x8] sm:$0xff]
    %v86 = vld [vmem:[%s6 + $0x10] sm:$0xff]
    %v87 = vld [vmem:[%s6 + $0x18] sm:$0xff]
    %v88 = vld [vmem:[%s6 + $0x20] sm:$0xff]
    %v89 = vld [vmem:[%s6 + $0x28] sm:$0xff]
    %v90 = vld [vmem:[%s6 + $0x30] sm:$0xff]
    %v91 = vld [vmem:[%s6 + $0x38] sm:$0xff]
    %v92 = vld [vmem:[%s6 + $0x40] sm:$0xff]
    %v93 = vld [vmem:[%s6 + $0x48] sm:$0xff]
    %v94 = vld [vmem:[%s6 + $0x50] sm:$0xff]
    %v95 = vld [vmem:[%s6 + $0x58] sm:$0xff]
    %v96 = vld [vmem:[%s6 + $0x60] sm:$0xff]
    %v97 = vld [vmem:[%s6 + $0x68] sm:$0xff]
    %v98 = vld [vmem:[%s6 + $0x70] sm:$0xff]
    %v99 = vld [vmem:[%s6 + $0x78] sm:$0xff]
    %v100 = vld [vmem:[%s6 + $0x80] sm:$0xff]
    %v101 = vld [vmem:[%s6 + $0x88] sm:$0xff]
    %v102 = vld [vmem:[%s6 + $0x90] sm:$0xff]
    %v103 = vld [vmem:[%s6 + $0x98] sm:$0xff]
    %v104 = vld [vmem:[%s6 + $0xa0] sm:$0xff]
    %v105 = vld [vmem:[%s6 + $0xa8] sm:$0xff]
    %v106 = vld [vmem:[%s6 + $0xb0] sm:$0xff]
    %v107 = vld [vmem:[%s6 + $0xb8] sm:$0xff]
    %v108 = vld [vmem:[%s6 + $0xc0] sm:$0xff]
    %v109 = vld [vmem:[%s6 + $0xc8] sm:$0xff]
    %v110 = vld [vmem:[%s6 + $0xd0] sm:$0xff]
    %v111 = vld [vmem:[%s6 + $0xd8] sm:$0xff]
    %v112 = vld [vmem:[%s6 + $0xe0] sm:$0xff]
    %v113 = vld [vmem:[%s6 + $0xe8] sm:$0xff]
    %v114 = vld [vmem:[%s6 + $0xf0] sm:$0xff]
    %v115 = vld [vmem:[%s6 + $0xf8] sm:$0xff]
    %v116 = vpack.c.bf16 %v76, %v76
    %v117 = vld [vmem:[%s7] sm:$0xff]
    %v118 = vld [vmem:[%s7 + $0x8] sm:$0xff]
    %v119 = vld [vmem:[%s7 + $0x10] sm:$0xff]
    %v120 = vld [vmem:[%s7 + $0x18] sm:$0xff]
    %v121 = vld [vmem:[%s7 + $0x20] sm:$0xff]
    %v122 = vld [vmem:[%s7 + $0x28] sm:$0xff]
    %v123 = vld [vmem:[%s7 + $0x30] sm:$0xff]
    %v124 = vld [vmem:[%s7 + $0x38] sm:$0xff]
    %v125 = vld [vmem:[%s7 + $0x40] sm:$0xff]
    %v126 = vld [vmem:[%s7 + $0x48] sm:$0xff]
    %v127 = vld [vmem:[%s7 + $0x50] sm:$0xff]
    %v128 = vld [vmem:[%s7 + $0x58] sm:$0xff]
    %v129 = vld [vmem:[%s7 + $0x60] sm:$0xff]
    %v130 = vld [vmem:[%s7 + $0x68] sm:$0xff]
    %v131 = vld [vmem:[%s7 + $0x70] sm:$0xff]
    %v132 = vld [vmem:[%s7 + $0x78] sm:$0xff]
    %v133 = vld [vmem:[%s7 + $0x80] sm:$0xff]
    %v134 = vld [vmem:[%s7 + $0x88] sm:$0xff]
    %v135 = vld [vmem:[%s7 + $0x90] sm:$0xff]
    %v136 = vld [vmem:[%s7 + $0x98] sm:$0xff]
    %v137 = vld [vmem:[%s7 + $0xa0] sm:$0xff]
    %v138 = vld [vmem:[%s7 + $0xa8] sm:$0xff]
    %v139 = vld [vmem:[%s7 + $0xb0] sm:$0xff]
    %v140 = vld [vmem:[%s7 + $0xb8] sm:$0xff]
    %v141 = vld [vmem:[%s7 + $0xc0] sm:$0xff]
    %v142 = vld [vmem:[%s7 + $0xc8] sm:$0xff]
    %v143 = vld [vmem:[%s7 + $0xd0] sm:$0xff]
    %v144 = vld [vmem:[%s7 + $0xd8] sm:$0xff]
    %v145 = vld [vmem:[%s7 + $0xe0] sm:$0xff]
    %v146 = vld [vmem:[%s7 + $0xe8] sm:$0xff]
    %v147 = vld [vmem:[%s7 + $0xf0] sm:$0xff]
    %v148 = vld [vmem:[%s7 + $0xf8] sm:$0xff]
    %v181 = vunpack.c.l.b16 %v117
    %v182 = vunpack.c.h.b16 %v117
    %v183 = vunpack.c.l.b16 %v118
    %v184 = vunpack.c.h.b16 %v118
    %v185 = vunpack.c.l.b16 %v119
    %v186 = vunpack.c.h.b16 %v119
    %v187 = vunpack.c.l.b16 %v120
    %v188 = vunpack.c.h.b16 %v120
    %v189 = vunpack.c.l.b16 %v121
    %v190 = vunpack.c.h.b16 %v121
    %v191 = vunpack.c.l.b16 %v122
    %v192 = vunpack.c.h.b16 %v122
    %v193 = vunpack.c.l.b16 %v123
    %v194 = vunpack.c.h.b16 %v123
    %v195 = vunpack.c.l.b16 %v124
    %v196 = vunpack.c.h.b16 %v124
    %v197 = vunpack.c.l.b16 %v125
    %v198 = vunpack.c.h.b16 %v125
    %v199 = vunpack.c.l.b16 %v126
    %v200 = vunpack.c.h.b16 %v126
    %v201 = vunpack.c.l.b16 %v127
    %v202 = vunpack.c.h.b16 %v127
    %v203 = vunpack.c.l.b16 %v128
    %v204 = vunpack.c.h.b16 %v128
    %v205 = vunpack.c.l.b16 %v129
    %v206 = vunpack.c.h.b16 %v129
    %v207 = vunpack.c.l.b16 %v130
    %v208 = vunpack.c.h.b16 %v130
    %v209 = vunpack.c.l.b16 %v131
    %v210 = vunpack.c.h.b16 %v131
    %v211 = vunpack.c.l.b16 %v132
    %v212 = vunpack.c.h.b16 %v132
    %v213 = vunpack.c.l.b16 %v133
    %v214 = vunpack.c.h.b16 %v133
    %v215 = vunpack.c.l.b16 %v134
    %v216 = vunpack.c.h.b16 %v134
    %v217 = vunpack.c.l.b16 %v135
    %v218 = vunpack.c.h.b16 %v135
    %v219 = vunpack.c.l.b16 %v136
    %v220 = vunpack.c.h.b16 %v136
    %v221 = vunpack.c.l.b16 %v137
    %v222 = vunpack.c.h.b16 %v137
    %v223 = vunpack.c.l.b16 %v138
    %v224 = vunpack.c.h.b16 %v138
    %v225 = vunpack.c.l.b16 %v139
    %v226 = vunpack.c.h.b16 %v139
    %v227 = vunpack.c.l.b16 %v140
    %v228 = vunpack.c.h.b16 %v140
    %v229 = vunpack.c.l.b16 %v141
    %v230 = vunpack.c.h.b16 %v141
    %v231 = vunpack.c.l.b16 %v142
    %v232 = vunpack.c.h.b16 %v142
    %v233 = vunpack.c.l.b16 %v143
    %v234 = vunpack.c.h.b16 %v143
    %v235 = vunpack.c.l.b16 %v144
    %v236 = vunpack.c.h.b16 %v144
    %v237 = vunpack.c.l.b16 %v145
    %v238 = vunpack.c.h.b16 %v145
    %v239 = vunpack.c.l.b16 %v146
    %v240 = vunpack.c.h.b16 %v146
    %v241 = vunpack.c.l.b16 %v147
    %v242 = vunpack.c.h.b16 %v147
    %v243 = vunpack.c.l.b16 %v148
    %v244 = vunpack.c.h.b16 %v148
    %v245 = vpack.c.b16 %v185, %v181
    %v246 = vpack.c.b16 %v186, %v182
    %v247 = vpack.c.b16 %v187, %v183
    %v248 = vpack.c.b16 %v188, %v184
    %v249 = vpack.c.b16 %v193, %v189
    %v250 = vpack.c.b16 %v194, %v190
    %v251 = vpack.c.b16 %v195, %v191
    %v252 = vpack.c.b16 %v196, %v192
    %v253 = vpack.c.b16 %v201, %v197
    %v254 = vpack.c.b16 %v202, %v198
    %v255 = vpack.c.b16 %v203, %v199
    %v256 = vpack.c.b16 %v204, %v200
    %v257 = vpack.c.b16 %v209, %v205
    %v258 = vpack.c.b16 %v210, %v206
    %v259 = vpack.c.b16 %v211, %v207
    %v260 = vpack.c.b16 %v212, %v208
    %v261 = vpack.c.b16 %v217, %v213
    %v262 = vpack.c.b16 %v218, %v214
    %v263 = vpack.c.b16 %v219, %v215
    %v264 = vpack.c.b16 %v220, %v216
    %v265 = vpack.c.b16 %v225, %v221
    %v266 = vpack.c.b16 %v226, %v222
    %v267 = vpack.c.b16 %v227, %v223
    %v268 = vpack.c.b16 %v228, %v224
    %v269 = vpack.c.b16 %v233, %v229
    %v270 = vpack.c.b16 %v234, %v230
    %v271 = vpack.c.b16 %v235, %v231
    %v272 = vpack.c.b16 %v236, %v232
    %v273 = vpack.c.b16 %v241, %v237
    %v274 = vpack.c.b16 %v242, %v238
    %v275 = vpack.c.b16 %v243, %v239
    %v276 = vpack.c.b16 %v244, %v240
    %309 = vmatpush.bf16.msra.mxu0 %v273
    %310 = vmatpush.bf16.msra.mxu0 %v269
    %311 = vmatpush.bf16.msra.mxu0 %v265
    %312 = vmatpush.bf16.msra.mxu0 %v261
    %313 = vmatpush.bf16.msra.mxu0 %v257
    %314 = vmatpush.bf16.msra.mxu0 %v253
    %315 = vmatpush.bf16.msra.mxu0 %v249
    %316 = vmatpush.bf16.msra.mxu0 %v245
    %317 = vmatmul.bf16.gmra.mxu0 %v116
    %v318 = vpop.f32.mrf.mxu0
    %v319 = vadd.f32 0.0, %v318
    %v320 = vpop.f32.mrf.mxu0
    %321 = vdwg.mxu0
    %322 = vmatpush.bf16.msra.mxu0 %v274
    %323 = vmatpush.bf16.msra.mxu0 %v270
    %324 = vmatpush.bf16.msra.mxu0 %v266
    %325 = vmatpush.bf16.msra.mxu0 %v262
    %326 = vmatpush.bf16.msra.mxu0 %v258
    %327 = vmatpush.bf16.msra.mxu0 %v254
    %328 = vmatpush.bf16.msra.mxu0 %v250
    %329 = vmatpush.bf16.msra.mxu0 %v246
    %330 = vmatmul.bf16.gmra.mxu0 %v116
    %v331 = vpop.f32.mrf.mxu0
    %v332 = vadd.f32 0.0, %v331
    %v333 = vpop.f32.mrf.mxu0
    %334 = vdwg.mxu0
    %335 = vmatpush.bf16.msra.mxu0 %v275
    %336 = vmatpush.bf16.msra.mxu0 %v271
    %337 = vmatpush.bf16.msra.mxu0 %v267
    %338 = vmatpush.bf16.msra.mxu0 %v263
    %339 = vmatpush.bf16.msra.mxu0 %v259
    %340 = vmatpush.bf16.msra.mxu0 %v255
    %341 = vmatpush.bf16.msra.mxu0 %v251
    %342 = vmatpush.bf16.msra.mxu0 %v247
    %343 = vmatmul.bf16.gmra.mxu0 %v116
    %v344 = vpop.f32.mrf.mxu0
    %v345 = vadd.f32 0.0, %v344
    %v346 = vpop.f32.mrf.mxu0
    %347 = vdwg.mxu0
    %348 = vmatpush.bf16.msra.mxu0 %v276
    %349 = vmatpush.bf16.msra.mxu0 %v272
    %350 = vmatpush.bf16.msra.mxu0 %v268
    %351 = vmatpush.bf16.msra.mxu0 %v264
    %352 = vmatpush.bf16.msra.mxu0 %v260
    %353 = vmatpush.bf16.msra.mxu0 %v256
    %354 = vmatpush.bf16.msra.mxu0 %v252
    %355 = vmatpush.bf16.msra.mxu0 %v248
    %356 = vmatmul.bf16.gmra.mxu0 %v116
    %v357 = vpop.f32.mrf.mxu0
    %v358 = vadd.f32 0.0, %v357
    %v359 = vpop.f32.mrf.mxu0
    %360 = vdwg.mxu0
    %v393 = vunpack.c.l.b16 %v84
    %v394 = vunpack.c.h.b16 %v84
    %v395 = vunpack.c.l.b16 %v85
    %v396 = vunpack.c.h.b16 %v85
    %v397 = vunpack.c.l.b16 %v86
    %v398 = vunpack.c.h.b16 %v86
    %v399 = vunpack.c.l.b16 %v87
    %v400 = vunpack.c.h.b16 %v87
    %v401 = vunpack.c.l.b16 %v88
    %v402 = vunpack.c.h.b16 %v88
    %v403 = vunpack.c.l.b16 %v89
    %v404 = vunpack.c.h.b16 %v89
    %v405 = vunpack.c.l.b16 %v90
    %v406 = vunpack.c.h.b16 %v90
    %v407 = vunpack.c.l.b16 %v91
    %v408 = vunpack.c.h.b16 %v91
    %v409 = vunpack.c.l.b16 %v92
    %v410 = vunpack.c.h.b16 %v92
    %v411 = vunpack.c.l.b16 %v93
    %v412 = vunpack.c.h.b16 %v93
    %v413 = vunpack.c.l.b16 %v94
    %v414 = vunpack.c.h.b16 %v94
    %v415 = vunpack.c.l.b16 %v95
    %v416 = vunpack.c.h.b16 %v95
    %v417 = vunpack.c.l.b16 %v96
    %v418 = vunpack.c.h.b16 %v96
    %v419 = vunpack.c.l.b16 %v97
    %v420 = vunpack.c.h.b16 %v97
    %v421 = vunpack.c.l.b16 %v98
    %v422 = vunpack.c.h.b16 %v98
    %v423 = vunpack.c.l.b16 %v99
    %v424 = vunpack.c.h.b16 %v99
    %v425 = vunpack.c.l.b16 %v100
    %v426 = vunpack.c.h.b16 %v100
    %v427 = vunpack.c.l.b16 %v101
    %v428 = vunpack.c.h.b16 %v101
    %v429 = vunpack.c.l.b16 %v102
    %v430 = vunpack.c.h.b16 %v102
    %v431 = vunpack.c.l.b16 %v103
    %v432 = vunpack.c.h.b16 %v103
    %v433 = vunpack.c.l.b16 %v104
    %v434 = vunpack.c.h.b16 %v104
    %v435 = vunpack.c.l.b16 %v105
    %v436 = vunpack.c.h.b16 %v105
    %v437 = vunpack.c.l.b16 %v106
    %v438 = vunpack.c.h.b16 %v106
    %v439 = vunpack.c.l.b16 %v107
    %v440 = vunpack.c.h.b16 %v107
    %v441 = vunpack.c.l.b16 %v108
    %v442 = vunpack.c.h.b16 %v108
    %v443 = vunpack.c.l.b16 %v109
    %v444 = vunpack.c.h.b16 %v109
    %v445 = vunpack.c.l.b16 %v110
    %v446 = vunpack.c.h.b16 %v110
    %v447 = vunpack.c.l.b16 %v111
    %v448 = vunpack.c.h.b16 %v111
    %v449 = vunpack.c.l.b16 %v112
    %v450 = vunpack.c.h.b16 %v112
    %v451 = vunpack.c.l.b16 %v113
    %v452 = vunpack.c.h.b16 %v113
    %v453 = vunpack.c.l.b16 %v114
    %v454 = vunpack.c.h.b16 %v114
    %v455 = vunpack.c.l.b16 %v115
    %v456 = vunpack.c.h.b16 %v115
    %v457 = vpack.c.b16 %v397, %v393
    %v458 = vpack.c.b16 %v398, %v394
    %v459 = vpack.c.b16 %v399, %v395
    %v460 = vpack.c.b16 %v400, %v396
    %v461 = vpack.c.b16 %v405, %v401
    %v462 = vpack.c.b16 %v406, %v402
    %v463 = vpack.c.b16 %v407, %v403
    %v464 = vpack.c.b16 %v408, %v404
    %v465 = vpack.c.b16 %v413, %v409
    %v466 = vpack.c.b16 %v414, %v410
    %v467 = vpack.c.b16 %v415, %v411
    %v468 = vpack.c.b16 %v416, %v412
    %v469 = vpack.c.b16 %v421, %v417
    %v470 = vpack.c.b16 %v422, %v418
    %v471 = vpack.c.b16 %v423, %v419
    %v472 = vpack.c.b16 %v424, %v420
    %v473 = vpack.c.b16 %v429, %v425
    %v474 = vpack.c.b16 %v430, %v426
    %v475 = vpack.c.b16 %v431, %v427
    %v476 = vpack.c.b16 %v432, %v428
    %v477 = vpack.c.b16 %v437, %v433
    %v478 = vpack.c.b16 %v438, %v434
    %v479 = vpack.c.b16 %v439, %v435
    %v480 = vpack.c.b16 %v440, %v436
    %v481 = vpack.c.b16 %v445, %v441
    %v482 = vpack.c.b16 %v446, %v442
    %v483 = vpack.c.b16 %v447, %v443
    %v484 = vpack.c.b16 %v448, %v444
    %v485 = vpack.c.b16 %v453, %v449
    %v486 = vpack.c.b16 %v454, %v450
    %v487 = vpack.c.b16 %v455, %v451
    %v488 = vpack.c.b16 %v456, %v452
    %521 = vmatpush.bf16.msra.mxu0 %v485
    %522 = vmatpush.bf16.msra.mxu0 %v481
    %523 = vmatpush.bf16.msra.mxu0 %v477
    %524 = vmatpush.bf16.msra.mxu0 %v473
    %525 = vmatpush.bf16.msra.mxu0 %v469
    %526 = vmatpush.bf16.msra.mxu0 %v465
    %527 = vmatpush.bf16.msra.mxu0 %v461
    %528 = vmatpush.bf16.msra.mxu0 %v457
    %529 = vmatmul.bf16.gmra.mxu0 %v81
    %v530 = vpop.f32.mrf.mxu0
    %v531 = vadd.f32 %v319, %v530
    %v532 = vpop.f32.mrf.mxu0
    %533 = vdwg.mxu0
    %534 = vmatpush.bf16.msra.mxu0 %v486
    %535 = vmatpush.bf16.msra.mxu0 %v482
    %536 = vmatpush.bf16.msra.mxu0 %v478
    %537 = vmatpush.bf16.msra.mxu0 %v474
    %538 = vmatpush.bf16.msra.mxu0 %v470
    %539 = vmatpush.bf16.msra.mxu0 %v466
    %540 = vmatpush.bf16.msra.mxu0 %v462
    %541 = vmatpush.bf16.msra.mxu0 %v458
    %542 = vmatmul.bf16.gmra.mxu0 %v81
    %v543 = vpop.f32.mrf.mxu0
    %v544 = vadd.f32 %v332, %v543
    %v545 = vpop.f32.mrf.mxu0
    %546 = vdwg.mxu0
    %547 = vmatpush.bf16.msra.mxu0 %v487
    %548 = vmatpush.bf16.msra.mxu0 %v483
    %549 = vmatpush.bf16.msra.mxu0 %v479
    %550 = vmatpush.bf16.msra.mxu0 %v475
    %551 = vmatpush.bf16.msra.mxu0 %v471
    %552 = vmatpush.bf16.msra.mxu0 %v467
    %553 = vmatpush.bf16.msra.mxu0 %v463
    %554 = vmatpush.bf16.msra.mxu0 %v459
    %555 = vmatmul.bf16.gmra.mxu0 %v81
    %v556 = vpop.f32.mrf.mxu0
    %v557 = vadd.f32 %v345, %v556
    %v558 = vpop.f32.mrf.mxu0
    %559 = vdwg.mxu0
    %560 = vmatpush.bf16.msra.mxu0 %v488
    %561 = vmatpush.bf16.msra.mxu0 %v484
    %562 = vmatpush.bf16.msra.mxu0 %v480
    %563 = vmatpush.bf16.msra.mxu0 %v476
    %564 = vmatpush.bf16.msra.mxu0 %v472
    %565 = vmatpush.bf16.msra.mxu0 %v468
    %566 = vmatpush.bf16.msra.mxu0 %v464
    %567 = vmatpush.bf16.msra.mxu0 %v460
    %568 = vmatmul.bf16.gmra.mxu0 %v81
    %v569 = vpop.f32.mrf.mxu0
    %v570 = vadd.f32 %v358, %v569
    %v571 = vpop.f32.mrf.mxu0
    %572 = vdwg.mxu0
    %v573 = vadd.f32 %v531, %v62
    %v574 = vadd.f32 %v544, %v63
    %v575 = vadd.f32 %v557, %v64
    %v576 = vadd.f32 %v570, %v65
    %v577 = vxor.u32 %v573, 2147483648
    %v578 = vmul.f32 %v577, 1.442695
    %v579 = vpow.pop %v578
    %v580 = vadd.f32 %v579, 1.0
    %v581 = vrcp.pop %v580
    %v582 = vmul.f32 %v580, %v581
    %v583 = vsub.f32 1.0, %v582
    %v584 = vmul.f32 %v581, %v583
    %v585 = vadd.f32 %v581, %v584
    %vm586 = vweird.f32 %v580
    %vm587 = vweird.f32 %v581
    %vm588 = vmor %vm586, %vm587
    %v589 = vsel %vm588, %v581, %v585
    %v590 = vand.u32 2147483647, %v580
    %vm591 = vcmp.eq.f32.partialorder %v590, 8.507059e+37
    %v592 = vand.u32 %v580, 2147483648
    %v593 = vor.u32 1.1754944e-38, %v592
    %v594 = vsel %vm591, %v593, %v589
    %v595 = vmul.f32 1.0, %v594
    %v596 = vxor.u32 %v574, 2147483648
    %v597 = vmul.f32 %v596, 1.442695
    %v598 = vpow.pop %v597
    %v599 = vadd.f32 %v598, 1.0
    %v600 = vrcp.pop %v599
    %v601 = vmul.f32 %v599, %v600
    %v602 = vsub.f32 1.0, %v601
    %v603 = vmul.f32 %v600, %v602
    %v604 = vadd.f32 %v600, %v603
    %vm605 = vweird.f32 %v599
    %vm606 = vweird.f32 %v600
    %vm607 = vmor %vm605, %vm606
    %v608 = vsel %vm607, %v600, %v604
    %v609 = vand.u32 2147483647, %v599
    %vm610 = vcmp.eq.f32.partialorder %v609, 8.507059e+37
    %v611 = vand.u32 %v599, 2147483648
    %v612 = vor.u32 1.1754944e-38, %v611
    %v613 = vsel %vm610, %v612, %v608
    %v614 = vmul.f32 1.0, %v613
    %v615 = vtanh.pop %v575
    %v616 = vxor.u32 %v576, 2147483648
    %v617 = vmul.f32 %v616, 1.442695
    %v618 = vpow.pop %v617
    %v619 = vadd.f32 %v618, 1.0
    %v620 = vrcp.pop %v619
    %v621 = vmul.f32 %v619, %v620
    %v622 = vsub.f32 1.0, %v621
    %v623 = vmul.f32 %v620, %v622
    %v624 = vadd.f32 %v620, %v623
    %vm625 = vweird.f32 %v619
    %vm626 = vweird.f32 %v620
    %vm627 = vmor %vm625, %vm626
    %v628 = vsel %vm627, %v620, %v624
    %v629 = vand.u32 2147483647, %v619
    %vm630 = vcmp.eq.f32.partialorder %v629, 8.507059e+37
    %v631 = vand.u32 %v619, 2147483648
    %v632 = vor.u32 1.1754944e-38, %v631
    %v633 = vsel %vm630, %v632, %v628
    %v634 = vmul.f32 1.0, %v633
    %v635 = vmul.f32 %v614, %v77
    %v636 = vmul.f32 %v595, %v615
    %v637 = vadd.f32 %v635, %v636
    %v638 = vtanh.pop %v637
    %v639 = vmul.f32 %v634, %v638
    %641 = vset.pattern.permute.xlu0 0
    %642 = vperm.xlu0 %641, %v83
    %v643 = vpop.permute.xlu0 %642
    %v645 = vmul.f32 %v643, %v639
    %v646 = vsub.f32 1.0, %v83
    %648 = vset.pattern.permute.xlu0 0
    %649 = vperm.xlu0 %648, %v646
    %v650 = vpop.permute.xlu0 %649
    %v652 = vmul.f32 %v650, %v76
    %v653 = vadd.f32 %v645, %v652
    %v654 = vmul.f32 %v643, %v637
    %v655 = vmul.f32 %v650, %v77
    %v656 = vadd.f32 %v654, %v655
    %s657 = scalar_lea.vmem [#allocation2], %s78
    %658 = vst [vmem:[%s657] sm:$0xff] %v645
  $region78: #{seq2seq_forward.1} parent=0 // loop_footer
    %s75 = sadd.s32 1, %s71
  $region79: #{seq2seq_forward.1} parent=0 // loop_footer_branch
    %70 = sbr.rel target = $region75
  $region80: #{seq2seq_forward.1} parent=0 // loop_exit
    _
  %v659 = vld [vmem:[#allocation2] sm:$0xff]
  %v660 = vld [vmem:[#allocation2 + $0x8] sm:$0xff]
  %v661 = vld [vmem:[#allocation2 + $0x10] sm:$0xff]
  %v662 = vld [vmem:[#allocation2 + $0x18] sm:$0xff]
  %v663 = vld [vmem:[#allocation2 + $0x20] sm:$0xff]
  %v664 = vld [vmem:[#allocation2 + $0x28] sm:$0xff]
  %v665 = vld [vmem:[#allocation2 + $0x30] sm:$0xff]
  %v666 = vld [vmem:[#allocation2 + $0x38] sm:$0xff]
  %v667 = vrot.slane %v661, 4
  %vm668 = vcmask 1047556
  %v669 = vsel %vm668, %v667, %v659
  %v670 = vrot.slane %v659, 4
  %v671 = vsel %vm668, %v661, %v670
  %v673 = vunpack.c.l.s4 1983009808
  %v674 = vunpack.c.0.s8 %v673
  %v675 = vperm.slane %v669, %v674
  %v677 = vunpack.c.l.s4 1983009808
  %v678 = vunpack.c.0.s8 %v677
  %v679 = vperm.slane %v671, %v678
  %v680 = vrot.slane %v662, 4
  %v681 = vsel %vm668, %v680, %v660
  %v682 = vrot.slane %v660, 4
  %v683 = vsel %vm668, %v662, %v682
  %v685 = vunpack.c.l.s4 1983009808
  %v686 = vunpack.c.0.s8 %v685
  %v687 = vperm.slane %v681, %v686
  %v689 = vunpack.c.l.s4 1983009808
  %v690 = vunpack.c.0.s8 %v689
  %v691 = vperm.slane %v683, %v690
  %v692 = vrot.slane %v665, 4
  %v693 = vsel %vm668, %v692, %v663
  %v694 = vrot.slane %v663, 4
  %v695 = vsel %vm668, %v665, %v694
  %v697 = vunpack.c.l.s4 1983009808
  %v698 = vunpack.c.0.s8 %v697
  %v699 = vperm.slane %v693, %v698
  %v701 = vunpack.c.l.s4 1983009808
  %v702 = vunpack.c.0.s8 %v701
  %v703 = vperm.slane %v695, %v702
  %v704 = vrot.slane %v666, 4
  %v705 = vsel %vm668, %v704, %v664
  %v706 = vrot.slane %v664, 4
  %v707 = vsel %vm668, %v666, %v706
  %v709 = vunpack.c.l.s4 1983009808
  %v710 = vunpack.c.0.s8 %v709
  %v711 = vperm.slane %v705, %v710
  %v713 = vunpack.c.l.s4 1983009808
  %v714 = vunpack.c.0.s8 %v713
  %v715 = vperm.slane %v707, %v714
  %v716 = vrot.slane %v687, 4
  %v717 = vsel %vm668, %v716, %v675
  %v718 = vrot.slane %v675, 4
  %v719 = vsel %vm668, %v687, %v718
  %v721 = vunpack.c.l.s4 1934713408
  %v722 = vunpack.c.0.s8 %v721
  %v723 = vperm.slane %v717, %v722
  %v725 = vunpack.c.l.s4 1934713408
  %v726 = vunpack.c.0.s8 %v725
  %v727 = vperm.slane %v719, %v726
  %v728 = vrot.slane %v691, 4
  %v729 = vsel %vm668, %v728, %v679
  %v730 = vrot.slane %v679, 4
  %v731 = vsel %vm668, %v691, %v730
  %v733 = vunpack.c.l.s4 1934713408
  %v734 = vunpack.c.0.s8 %v733
  %v735 = vperm.slane %v729, %v734
  %v737 = vunpack.c.l.s4 1934713408
  %v738 = vunpack.c.0.s8 %v737
  %v739 = vperm.slane %v731, %v738
  %v740 = vrot.slane %v711, 4
  %v741 = vsel %vm668, %v740, %v699
  %v742 = vrot.slane %v699, 4
  %v743 = vsel %vm668, %v711, %v742
  %v745 = vunpack.c.l.s4 1934713408
  %v746 = vunpack.c.0.s8 %v745
  %v747 = vperm.slane %v741, %v746
  %v749 = vunpack.c.l.s4 1934713408
  %v750 = vunpack.c.0.s8 %v749
  %v751 = vperm.slane %v743, %v750
  %v752 = vrot.slane %v715, 4
  %v753 = vsel %vm668, %v752, %v703
  %v754 = vrot.slane %v703, 4
  %v755 = vsel %vm668, %v715, %v754
  %v757 = vunpack.c.l.s4 1934713408
  %v758 = vunpack.c.0.s8 %v757
  %v759 = vperm.slane %v753, %v758
  %v761 = vunpack.c.l.s4 1934713408
  %v762 = vunpack.c.0.s8 %v761
  %v763 = vperm.slane %v755, %v762
  %v764 = vrot.slane %v747, 4
  %v765 = vsel %vm668, %v764, %v723
  %v766 = vrot.slane %v723, 4
  %v767 = vsel %vm668, %v747, %v766
  %v768 = vrot.slane %v751, 4
  %v769 = vsel %vm668, %v768, %v727
  %v770 = vrot.slane %v727, 4
  %v771 = vsel %vm668, %v751, %v770
  %v772 = vrot.slane %v759, 4
  %v773 = vsel %vm668, %v772, %v735
  %v774 = vrot.slane %v735, 4
  %v775 = vsel %vm668, %v759, %v774
  %v776 = vrot.slane %v763, 4
  %v777 = vsel %vm668, %v776, %v739
  %v778 = vrot.slane %v739, 4
  %v779 = vsel %vm668, %v763, %v778
  %v780 = vpack.c.bf16 %v765, %v765
  %v781 = vpack.c.bf16 %v767, %v767
  %v782 = vpack.c.bf16 %v769, %v769
  %v783 = vpack.c.bf16 %v771, %v771
  %v784 = vpack.c.bf16 %v773, %v773
  %v785 = vpack.c.bf16 %v775, %v775
  %v786 = vpack.c.bf16 %v777, %v777
  %v787 = vpack.c.bf16 %v779, %v779
  %788 = vst [vmem:[#allocation3] sm:$0xf] %v780
  %789 = vst [vmem:[#allocation3 + $0x4] sm:$0xf] %v781
  %790 = vst [vmem:[#allocation3 + $0x8] sm:$0xf] %v782
  %791 = vst [vmem:[#allocation3 + $0xc] sm:$0xf] %v783
  %792 = vst [vmem:[#allocation3 + $0x10] sm:$0xf] %v784
  %793 = vst [vmem:[#allocation3 + $0x14] sm:$0xf] %v785
  %794 = vst [vmem:[#allocation3 + $0x18] sm:$0xf] %v786
  %795 = vst [vmem:[#allocation3 + $0x1c] sm:$0xf] %v787
  %v796 = vld [vmem:[%s2] sm:$0x1]
  %v797 = vld [vmem:[%s2 + $0x1] sm:$0x1]
  %v798 = vld [vmem:[%s2 + $0x2] sm:$0x1]
  %v799 = vld [vmem:[%s2 + $0x3] sm:$0x1]
  %v800 = vld [vmem:[%s2 + $0x4] sm:$0x1]
  %v801 = vld [vmem:[%s2 + $0x5] sm:$0x1]
  %v802 = vld [vmem:[%s2 + $0x6] sm:$0x1]
  %v803 = vld [vmem:[%s2 + $0x7] sm:$0x1]
  %v804 = vld [vmem:[%s3] sm:$0xff]
  %v805 = vpack.c.bf16 %v804, %v804
  %v806 = vld [vmem:[%s10] sm:$0xff]
  %v807 = vld [vmem:[%s10 + $0x8] sm:$0xff]
  %v808 = vld [vmem:[%s10 + $0x10] sm:$0xff]
  %v809 = vld [vmem:[%s10 + $0x18] sm:$0xff]
  %v810 = vld [vmem:[%s10 + $0x20] sm:$0xff]
  %v811 = vld [vmem:[%s10 + $0x28] sm:$0xff]
  %v812 = vld [vmem:[%s10 + $0x30] sm:$0xff]
  %v813 = vld [vmem:[%s10 + $0x38] sm:$0xff]
  %v814 = vld [vmem:[%s10 + $0x40] sm:$0xff]
  %v815 = vld [vmem:[%s10 + $0x48] sm:$0xff]
  %v816 = vld [vmem:[%s10 + $0x50] sm:$0xff]
  %v817 = vld [vmem:[%s10 + $0x58] sm:$0xff]
  %v818 = vld [vmem:[%s10 + $0x60] sm:$0xff]
  %v819 = vld [vmem:[%s10 + $0x68] sm:$0xff]
  %v820 = vld [vmem:[%s10 + $0x70] sm:$0xff]
  %v821 = vld [vmem:[%s10 + $0x78] sm:$0xff]
  %v822 = vld [vmem:[%s10 + $0x80] sm:$0xff]
  %v823 = vld [vmem:[%s10 + $0x88] sm:$0xff]
  %v824 = vld [vmem:[%s10 + $0x90] sm:$0xff]
  %v825 = vld [vmem:[%s10 + $0x98] sm:$0xff]
  %v826 = vld [vmem:[%s10 + $0xa0] sm:$0xff]
  %v827 = vld [vmem:[%s10 + $0xa8] sm:$0xff]
  %v828 = vld [vmem:[%s10 + $0xb0] sm:$0xff]
  %v829 = vld [vmem:[%s10 + $0xb8] sm:$0xff]
  %v830 = vld [vmem:[%s10 + $0xc0] sm:$0xff]
  %v831 = vld [vmem:[%s10 + $0xc8] sm:$0xff]
  %v832 = vld [vmem:[%s10 + $0xd0] sm:$0xff]
  %v833 = vld [vmem:[%s10 + $0xd8] sm:$0xff]
  %v834 = vld [vmem:[%s10 + $0xe0] sm:$0xff]
  %v835 = vld [vmem:[%s10 + $0xe8] sm:$0xff]
  %v836 = vld [vmem:[%s10 + $0xf0] sm:$0xff]
  %v837 = vld [vmem:[%s10 + $0xf8] sm:$0xff]
  %v838 = vld [vmem:[%s12] sm:$0xf]
  %v840 = vperm.slane %v838, 0
  %v841 = vperm.slane %v838, 1
  %v842 = vperm.slane %v838, 2
  %v843 = vperm.slane %v838, 3
  %v880 = vunpack.c.l.b16 %v806
  %v881 = vunpack.c.h.b16 %v806
  %v882 = vunpack.c.l.b16 %v807
  %v883 = vunpack.c.h.b16 %v807
  %v884 = vunpack.c.l.b16 %v808
  %v885 = vunpack.c.h.b16 %v808
  %v886 = vunpack.c.l.b16 %v809
  %v887 = vunpack.c.h.b16 %v809
  %v888 = vunpack.c.l.b16 %v810
  %v889 = vunpack.c.h.b16 %v810
  %v890 = vunpack.c.l.b16 %v811
  %v891 = vunpack.c.h.b16 %v811
  %v892 = vunpack.c.l.b16 %v812
  %v893 = vunpack.c.h.b16 %v812
  %v894 = vunpack.c.l.b16 %v813
  %v895 = vunpack.c.h.b16 %v813
  %v896 = vunpack.c.l.b16 %v814
  %v897 = vunpack.c.h.b16 %v814
  %v898 = vunpack.c.l.b16 %v815
  %v899 = vunpack.c.h.b16 %v815
  %v900 = vunpack.c.l.b16 %v816
  %v901 = vunpack.c.h.b16 %v816
  %v902 = vunpack.c.l.b16 %v817
  %v903 = vunpack.c.h.b16 %v817
  %v904 = vunpack.c.l.b16 %v818
  %v905 = vunpack.c.h.b16 %v818
  %v906 = vunpack.c.l.b16 %v819
  %v907 = vunpack.c.h.b16 %v819
  %v908 = vunpack.c.l.b16 %v820
  %v909 = vunpack.c.h.b16 %v820
  %v910 = vunpack.c.l.b16 %v821
  %v911 = vunpack.c.h.b16 %v821
  %v912 = vunpack.c.l.b16 %v822
  %v913 = vunpack.c.h.b16 %v822
  %v914 = vunpack.c.l.b16 %v823
  %v915 = vunpack.c.h.b16 %v823
  %v916 = vunpack.c.l.b16 %v824
  %v917 = vunpack.c.h.b16 %v824
  %v918 = vunpack.c.l.b16 %v825
  %v919 = vunpack.c.h.b16 %v825
  %v920 = vunpack.c.l.b16 %v826
  %v921 = vunpack.c.h.b16 %v826
  %v922 = vunpack.c.l.b16 %v827
  %v923 = vunpack.c.h.b16 %v827
  %v924 = vunpack.c.l.b16 %v828
  %v925 = vunpack.c.h.b16 %v828
  %v926 = vunpack.c.l.b16 %v829
  %v927 = vunpack.c.h.b16 %v829
  %v928 = vunpack.c.l.b16 %v830
  %v929 = vunpack.c.h.b16 %v830
  %v930 = vunpack.c.l.b16 %v831
  %v931 = vunpack.c.h.b16 %v831
  %v932 = vunpack.c.l.b16 %v832
  %v933 = vunpack.c.h.b16 %v832
  %v934 = vunpack.c.l.b16 %v833
  %v935 = vunpack.c.h.b16 %v833
  %v936 = vunpack.c.l.b16 %v834
  %v937 = vunpack.c.h.b16 %v834
  %v938 = vunpack.c.l.b16 %v835
  %v939 = vunpack.c.h.b16 %v835
  %v940 = vunpack.c.l.b16 %v836
  %v941 = vunpack.c.h.b16 %v836
  %v942 = vunpack.c.l.b16 %v837
  %v943 = vunpack.c.h.b16 %v837
  %v944 = vpack.c.b16 %v884, %v880
  %v945 = vpack.c.b16 %v885, %v881
  %v946 = vpack.c.b16 %v886, %v882
  %v947 = vpack.c.b16 %v887, %v883
  %v948 = vpack.c.b16 %v892, %v888
  %v949 = vpack.c.b16 %v893, %v889
  %v950 = vpack.c.b16 %v894, %v890
  %v951 = vpack.c.b16 %v895, %v891
  %v952 = vpack.c.b16 %v900, %v896
  %v953 = vpack.c.b16 %v901, %v897
  %v954 = vpack.c.b16 %v902, %v898
  %v955 = vpack.c.b16 %v903, %v899
  %v956 = vpack.c.b16 %v908, %v904
  %v957 = vpack.c.b16 %v909, %v905
  %v958 = vpack.c.b16 %v910, %v906
  %v959 = vpack.c.b16 %v911, %v907
  %v960 = vpack.c.b16 %v916, %v912
  %v961 = vpack.c.b16 %v917, %v913
  %v962 = vpack.c.b16 %v918, %v914
  %v963 = vpack.c.b16 %v919, %v915
  %v964 = vpack.c.b16 %v924, %v920
  %v965 = vpack.c.b16 %v925, %v921
  %v966 = vpack.c.b16 %v926, %v922
  %v967 = vpack.c.b16 %v927, %v923
  %v968 = vpack.c.b16 %v932, %v928
  %v969 = vpack.c.b16 %v933, %v929
  %v970 = vpack.c.b16 %v934, %v930
  %v971 = vpack.c.b16 %v935, %v931
  %v972 = vpack.c.b16 %v940, %v936
  %v973 = vpack.c.b16 %v941, %v937
  %v974 = vpack.c.b16 %v942, %v938
  %v975 = vpack.c.b16 %v943, %v939
  %1008 = vmatpush.bf16.msra.mxu0 %v972
  %1009 = vmatpush.bf16.msra.mxu0 %v968
  %1010 = vmatpush.bf16.msra.mxu0 %v964
  %1011 = vmatpush.bf16.msra.mxu0 %v960
  %1012 = vmatpush.bf16.msra.mxu0 %v956
  %1013 = vmatpush.bf16.msra.mxu0 %v952
  %1014 = vmatpush.bf16.msra.mxu0 %v948
  %1015 = vmatpush.bf16.msra.mxu0 %v944
  %1016 = vmatmul.bf16.gmra.mxu0 %v805
  %v1017 = vpop.f32.mrf.mxu0
  %v1018 = vadd.f32 %v840, %v1017
  %v1019 = vpop.f32.mrf.mxu0
  %1020 = vdwg.mxu0
  %1021 = vmatpush.bf16.msra.mxu0 %v973
  %1022 = vmatpush.bf16.msra.mxu0 %v969
  %1023 = vmatpush.bf16.msra.mxu0 %v965
  %1024 = vmatpush.bf16.msra.mxu0 %v961
  %1025 = vmatpush.bf16.msra.mxu0 %v957
  %1026 = vmatpush.bf16.msra.mxu0 %v953
  %1027 = vmatpush.bf16.msra.mxu0 %v949
  %1028 = vmatpush.bf16.msra.mxu0 %v945
  %1029 = vmatmul.bf16.gmra.mxu0 %v805
  %v1030 = vpop.f32.mrf.mxu0
  %v1031 = vadd.f32 %v841, %v1030
  %v1032 = vpop.f32.mrf.mxu0
  %1033 = vdwg.mxu0
  %1034 = vmatpush.bf16.msra.mxu0 %v974
  %1035 = vmatpush.bf16.msra.mxu0 %v970
  %1036 = vmatpush.bf16.msra.mxu0 %v966
  %1037 = vmatpush.bf16.msra.mxu0 %v962
  %1038 = vmatpush.bf16.msra.mxu0 %v958
  %1039 = vmatpush.bf16.msra.mxu0 %v954
  %1040 = vmatpush.bf16.msra.mxu0 %v950
  %1041 = vmatpush.bf16.msra.mxu0 %v946
  %1042 = vmatmul.bf16.gmra.mxu0 %v805
  %v1043 = vpop.f32.mrf.mxu0
  %v1044 = vadd.f32 %v842, %v1043
  %v1045 = vpop.f32.mrf.mxu0
  %1046 = vdwg.mxu0
  %1047 = vmatpush.bf16.msra.mxu0 %v975
  %1048 = vmatpush.bf16.msra.mxu0 %v971
  %1049 = vmatpush.bf16.msra.mxu0 %v967
  %1050 = vmatpush.bf16.msra.mxu0 %v963
  %1051 = vmatpush.bf16.msra.mxu0 %v959
  %1052 = vmatpush.bf16.msra.mxu0 %v955
  %1053 = vmatpush.bf16.msra.mxu0 %v951
  %1054 = vmatpush.bf16.msra.mxu0 %v947
  %1055 = vmatmul.bf16.gmra.mxu0 %v805
  %v1056 = vpop.f32.mrf.mxu0
  %v1057 = vadd.f32 %v843, %v1056
  %v1058 = vpop.f32.mrf.mxu0
  %1059 = vdwg.mxu0
  %v1060 = vld [vmem:[%s15] sm:$0x1]
  %v1062 = vperm.slane %v1060, 0
  %v1064 = vld [vmem:[%s17] sm:$0x1]
  %v1066 = vperm.slane %v1064, 0
  %v1068 = vlaneseq
  %v1069 = vand.u32 %v1068, 127
  %v1070 = vld [vmem:[%s4] sm:$0xff]
  loop: start=0, step=1, limit=6
  $region81: #{seq2seq_forward.1} parent=0 // loop_pre_header
    _
  $region82: #{seq2seq_forward.1} parent=0 // loop_header
    %s1072 = sphi 0, %s1076
    %p1073 = scmp.ge.s32.totalorder %s1072, 6
    %v1077 = vphi %v76, %v1648
    %v1078 = vphi %v77, %v1646
    %v1079 = vphi %v1070, %v2482
  $region83: #{seq2seq_forward.1} parent=0 // loop_header_branch
    %1075 = sbr.rel (%p1073) target = $region87
  $region84: #{seq2seq_forward.1} parent=0 // loop_body
    %p1080 = scmp.lt.s32.totalorder %s1072, 0
    %s1081 = ssub.s32 0, %s1072
    %s1082 = scalar_select %p1080, %s1081, %s1072
    %s1083 = sand.u32 %s1082, 1
    %s1084 = ssub.s32 0, %s1083
    %s1085 = scalar_select %p1080, %s1084, %s1083
    %p1086 = scmp.ne.s32.totalorder %s1085, 0
    %p1087 = scmp.lt.s32.totalorder %s1085, 0
    %p1088 = pnand %p1087, %p1086
    %p1089 = pneg %p1088
    %s1090 = sadd.s32 %s1085, 2
    %s1091 = scalar_select %p1089, %s1090, %s1085
    %v1092 = vpack.c.bf16 %v1079, %v1079
    %v1093 = vld [vmem:[%s9] sm:$0xff]
    %v1094 = vld [vmem:[%s9 + $0x8] sm:$0xff]
    %v1095 = vld [vmem:[%s9 + $0x10] sm:$0xff]
    %v1096 = vld [vmem:[%s9 + $0x18] sm:$0xff]
    %v1097 = vld [vmem:[%s9 + $0x20] sm:$0xff]
    %v1098 = vld [vmem:[%s9 + $0x28] sm:$0xff]
    %v1099 = vld [vmem:[%s9 + $0x30] sm:$0xff]
    %v1100 = vld [vmem:[%s9 + $0x38] sm:$0xff]
    %v1101 = vld [vmem:[%s9 + $0x40] sm:$0xff]
    %v1102 = vld [vmem:[%s9 + $0x48] sm:$0xff]
    %v1103 = vld [vmem:[%s9 + $0x50] sm:$0xff]
    %v1104 = vld [vmem:[%s9 + $0x58] sm:$0xff]
    %v1105 = vld [vmem:[%s9 + $0x60] sm:$0xff]
    %v1106 = vld [vmem:[%s9 + $0x68] sm:$0xff]
    %v1107 = vld [vmem:[%s9 + $0x70] sm:$0xff]
    %v1108 = vld [vmem:[%s9 + $0x78] sm:$0xff]
    %v1109 = vld [vmem:[%s9 + $0x80] sm:$0xff]
    %v1110 = vld [vmem:[%s9 + $0x88] sm:$0xff]
    %v1111 = vld [vmem:[%s9 + $0x90] sm:$0xff]
    %v1112 = vld [vmem:[%s9 + $0x98] sm:$0xff]
    %v1113 = vld [vmem:[%s9 + $0xa0] sm:$0xff]
    %v1114 = vld [vmem:[%s9 + $0xa8] sm:$0xff]
    %v1115 = vld [vmem:[%s9 + $0xb0] sm:$0xff]
    %v1116 = vld [vmem:[%s9 + $0xb8] sm:$0xff]
    %v1117 = vld [vmem:[%s9 + $0xc0] sm:$0xff]
    %v1118 = vld [vmem:[%s9 + $0xc8] sm:$0xff]
    %v1119 = vld [vmem:[%s9 + $0xd0] sm:$0xff]
    %v1120 = vld [vmem:[%s9 + $0xd8] sm:$0xff]
    %v1121 = vld [vmem:[%s9 + $0xe0] sm:$0xff]
    %v1122 = vld [vmem:[%s9 + $0xe8] sm:$0xff]
    %v1123 = vld [vmem:[%s9 + $0xf0] sm:$0xff]
    %v1124 = vld [vmem:[%s9 + $0xf8] sm:$0xff]
    %v1125 = vpack.c.bf16 %v1077, %v1077
    %v1126 = vld [vmem:[%s11] sm:$0xff]
    %v1127 = vld [vmem:[%s11 + $0x8] sm:$0xff]
    %v1128 = vld [vmem:[%s11 + $0x10] sm:$0xff]
    %v1129 = vld [vmem:[%s11 + $0x18] sm:$0xff]
    %v1130 = vld [vmem:[%s11 + $0x20] sm:$0xff]
    %v1131 = vld [vmem:[%s11 + $0x28] sm:$0xff]
    %v1132 = vld [vmem:[%s11 + $0x30] sm:$0xff]
    %v1133 = vld [vmem:[%s11 + $0x38] sm:$0xff]
    %v1134 = vld [vmem:[%s11 + $0x40] sm:$0xff]
    %v1135 = vld [vmem:[%s11 + $0x48] sm:$0xff]
    %v1136 = vld [vmem:[%s11 + $0x50] sm:$0xff]
    %v1137 = vld [vmem:[%s11 + $0x58] sm:$0xff]
    %v1138 = vld [vmem:[%s11 + $0x60] sm:$0xff]
    %v1139 = vld [vmem:[%s11 + $0x68] sm:$0xff]
    %v1140 = vld [vmem:[%s11 + $0x70] sm:$0xff]
    %v1141 = vld [vmem:[%s11 + $0x78] sm:$0xff]
    %v1142 = vld [vmem:[%s11 + $0x80] sm:$0xff]
    %v1143 = vld [vmem:[%s11 + $0x88] sm:$0xff]
    %v1144 = vld [vmem:[%s11 + $0x90] sm:$0xff]
    %v1145 = vld [vmem:[%s11 + $0x98] sm:$0xff]
    %v1146 = vld [vmem:[%s11 + $0xa0] sm:$0xff]
    %v1147 = vld [vmem:[%s11 + $0xa8] sm:$0xff]
    %v1148 = vld [vmem:[%s11 + $0xb0] sm:$0xff]
    %v1149 = vld [vmem:[%s11 + $0xb8] sm:$0xff]
    %v1150 = vld [vmem:[%s11 + $0xc0] sm:$0xff]
    %v1151 = vld [vmem:[%s11 + $0xc8] sm:$0xff]
    %v1152 = vld [vmem:[%s11 + $0xd0] sm:$0xff]
    %v1153 = vld [vmem:[%s11 + $0xd8] sm:$0xff]
    %v1154 = vld [vmem:[%s11 + $0xe0] sm:$0xff]
    %v1155 = vld [vmem:[%s11 + $0xe8] sm:$0xff]
    %v1156 = vld [vmem:[%s11 + $0xf0] sm:$0xff]
    %v1157 = vld [vmem:[%s11 + $0xf8] sm:$0xff]
    %v1190 = vunpack.c.l.b16 %v1126
    %v1191 = vunpack.c.h.b16 %v1126
    %v1192 = vunpack.c.l.b16 %v1127
    %v1193 = vunpack.c.h.b16 %v1127
    %v1194 = vunpack.c.l.b16 %v1128
    %v1195 = vunpack.c.h.b16 %v1128
    %v1196 = vunpack.c.l.b16 %v1129
    %v1197 = vunpack.c.h.b16 %v1129
    %v1198 = vunpack.c.l.b16 %v1130
    %v1199 = vunpack.c.h.b16 %v1130
    %v1200 = vunpack.c.l.b16 %v1131
    %v1201 = vunpack.c.h.b16 %v1131
    %v1202 = vunpack.c.l.b16 %v1132
    %v1203 = vunpack.c.h.b16 %v1132
    %v1204 = vunpack.c.l.b16 %v1133
    %v1205 = vunpack.c.h.b16 %v1133
    %v1206 = vunpack.c.l.b16 %v1134
    %v1207 = vunpack.c.h.b16 %v1134
    %v1208 = vunpack.c.l.b16 %v1135
    %v1209 = vunpack.c.h.b16 %v1135
    %v1210 = vunpack.c.l.b16 %v1136
    %v1211 = vunpack.c.h.b16 %v1136
    %v1212 = vunpack.c.l.b16 %v1137
    %v1213 = vunpack.c.h.b16 %v1137
    %v1214 = vunpack.c.l.b16 %v1138
    %v1215 = vunpack.c.h.b16 %v1138
    %v1216 = vunpack.c.l.b16 %v1139
    %v1217 = vunpack.c.h.b16 %v1139
    %v1218 = vunpack.c.l.b16 %v1140
    %v1219 = vunpack.c.h.b16 %v1140
    %v1220 = vunpack.c.l.b16 %v1141
    %v1221 = vunpack.c.h.b16 %v1141
    %v1222 = vunpack.c.l.b16 %v1142
    %v1223 = vunpack.c.h.b16 %v1142
    %v1224 = vunpack.c.l.b16 %v1143
    %v1225 = vunpack.c.h.b16 %v1143
    %v1226 = vunpack.c.l.b16 %v1144
    %v1227 = vunpack.c.h.b16 %v1144
    %v1228 = vunpack.c.l.b16 %v1145
    %v1229 = vunpack.c.h.b16 %v1145
    %v1230 = vunpack.c.l.b16 %v1146
    %v1231 = vunpack.c.h.b16 %v1146
    %v1232 = vunpack.c.l.b16 %v1147
    %v1233 = vunpack.c.h.b16 %v1147
    %v1234 = vunpack.c.l.b16 %v1148
    %v1235 = vunpack.c.h.b16 %v1148
    %v1236 = vunpack.c.l.b16 %v1149
    %v1237 = vunpack.c.h.b16 %v1149
    %v1238 = vunpack.c.l.b16 %v1150
    %v1239 = vunpack.c.h.b16 %v1150
    %v1240 = vunpack.c.l.b16 %v1151
    %v1241 = vunpack.c.h.b16 %v1151
    %v1242 = vunpack.c.l.b16 %v1152
    %v1243 = vunpack.c.h.b16 %v1152
    %v1244 = vunpack.c.l.b16 %v1153
    %v1245 = vunpack.c.h.b16 %v1153
    %v1246 = vunpack.c.l.b16 %v1154
    %v1247 = vunpack.c.h.b16 %v1154
    %v1248 = vunpack.c.l.b16 %v1155
    %v1249 = vunpack.c.h.b16 %v1155
    %v1250 = vunpack.c.l.b16 %v1156
    %v1251 = vunpack.c.h.b16 %v1156
    %v1252 = vunpack.c.l.b16 %v1157
    %v1253 = vunpack.c.h.b16 %v1157
    %v1254 = vpack.c.b16 %v1194, %v1190
    %v1255 = vpack.c.b16 %v1195, %v1191
    %v1256 = vpack.c.b16 %v1196, %v1192
    %v1257 = vpack.c.b16 %v1197, %v1193
    %v1258 = vpack.c.b16 %v1202, %v1198
    %v1259 = vpack.c.b16 %v1203, %v1199
    %v1260 = vpack.c.b16 %v1204, %v1200
    %v1261 = vpack.c.b16 %v1205, %v1201
    %v1262 = vpack.c.b16 %v1210, %v1206
    %v1263 = vpack.c.b16 %v1211, %v1207
    %v1264 = vpack.c.b16 %v1212, %v1208
    %v1265 = vpack.c.b16 %v1213, %v1209
    %v1266 = vpack.c.b16 %v1218, %v1214
    %v1267 = vpack.c.b16 %v1219, %v1215
    %v1268 = vpack.c.b16 %v1220, %v1216
    %v1269 = vpack.c.b16 %v1221, %v1217
    %v1270 = vpack.c.b16 %v1226, %v1222
    %v1271 = vpack.c.b16 %v1227, %v1223
    %v1272 = vpack.c.b16 %v1228, %v1224
    %v1273 = vpack.c.b16 %v1229, %v1225
    %v1274 = vpack.c.b16 %v1234, %v1230
    %v1275 = vpack.c.b16 %v1235, %v1231
    %v1276 = vpack.c.b16 %v1236, %v1232
    %v1277 = vpack.c.b16 %v1237, %v1233
    %v1278 = vpack.c.b16 %v1242, %v1238
    %v1279 = vpack.c.b16 %v1243, %v1239
    %v1280 = vpack.c.b16 %v1244, %v1240
    %v1281 = vpack.c.b16 %v1245, %v1241
    %v1282 = vpack.c.b16 %v1250, %v1246
    %v1283 = vpack.c.b16 %v1251, %v1247
    %v1284 = vpack.c.b16 %v1252, %v1248
    %v1285 = vpack.c.b16 %v1253, %v1249
    %1318 = vmatpush.bf16.msra.mxu0 %v1282
    %1319 = vmatpush.bf16.msra.mxu0 %v1278
    %1320 = vmatpush.bf16.msra.mxu0 %v1274
    %1321 = vmatpush.bf16.msra.mxu0 %v1270
    %1322 = vmatpush.bf16.msra.mxu0 %v1266
    %1323 = vmatpush.bf16.msra.mxu0 %v1262
    %1324 = vmatpush.bf16.msra.mxu0 %v1258
    %1325 = vmatpush.bf16.msra.mxu0 %v1254
    %1326 = vmatmul.bf16.gmra.mxu0 %v1125
    %v1327 = vpop.f32.mrf.mxu0
    %v1328 = vadd.f32 0.0, %v1327
    %v1329 = vpop.f32.mrf.mxu0
    %1330 = vdwg.mxu0
    %1331 = vmatpush.bf16.msra.mxu0 %v1283
    %1332 = vmatpush.bf16.msra.mxu0 %v1279
    %1333 = vmatpush.bf16.msra.mxu0 %v1275
    %1334 = vmatpush.bf16.msra.mxu0 %v1271
    %1335 = vmatpush.bf16.msra.mxu0 %v1267
    %1336 = vmatpush.bf16.msra.mxu0 %v1263
    %1337 = vmatpush.bf16.msra.mxu0 %v1259
    %1338 = vmatpush.bf16.msra.mxu0 %v1255
    %1339 = vmatmul.bf16.gmra.mxu0 %v1125
    %v1340 = vpop.f32.mrf.mxu0
    %v1341 = vadd.f32 0.0, %v1340
    %v1342 = vpop.f32.mrf.mxu0
    %1343 = vdwg.mxu0
    %1344 = vmatpush.bf16.msra.mxu0 %v1284
    %1345 = vmatpush.bf16.msra.mxu0 %v1280
    %1346 = vmatpush.bf16.msra.mxu0 %v1276
    %1347 = vmatpush.bf16.msra.mxu0 %v1272
    %1348 = vmatpush.bf16.msra.mxu0 %v1268
    %1349 = vmatpush.bf16.msra.mxu0 %v1264
    %1350 = vmatpush.bf16.msra.mxu0 %v1260
    %1351 = vmatpush.bf16.msra.mxu0 %v1256
    %1352 = vmatmul.bf16.gmra.mxu0 %v1125
    %v1353 = vpop.f32.mrf.mxu0
    %v1354 = vadd.f32 0.0, %v1353
    %v1355 = vpop.f32.mrf.mxu0
    %1356 = vdwg.mxu0
    %1357 = vmatpush.bf16.msra.mxu0 %v1285
    %1358 = vmatpush.bf16.msra.mxu0 %v1281
    %1359 = vmatpush.bf16.msra.mxu0 %v1277
    %1360 = vmatpush.bf16.msra.mxu0 %v1273
    %1361 = vmatpush.bf16.msra.mxu0 %v1269
    %1362 = vmatpush.bf16.msra.mxu0 %v1265
    %1363 = vmatpush.bf16.msra.mxu0 %v1261
    %1364 = vmatpush.bf16.msra.mxu0 %v1257
    %1365 = vmatmul.bf16.gmra.mxu0 %v1125
    %v1366 = vpop.f32.mrf.mxu0
    %v1367 = vadd.f32 0.0, %v1366
    %v1368 = vpop.f32.mrf.mxu0
    %1369 = vdwg.mxu0
    %v1402 = vunpack.c.l.b16 %v1093
    %v1403 = vunpack.c.h.b16 %v1093
    %v1404 = vunpack.c.l.b16 %v1094
    %v1405 = vunpack.c.h.b16 %v1094
    %v1406 = vunpack.c.l.b16 %v1095
    %v1407 = vunpack.c.h.b16 %v1095
    %v1408 = vunpack.c.l.b16 %v1096
    %v1409 = vunpack.c.h.b16 %v1096
    %v1410 = vunpack.c.l.b16 %v1097
    %v1411 = vunpack.c.h.b16 %v1097
    %v1412 = vunpack.c.l.b16 %v1098
    %v1413 = vunpack.c.h.b16 %v1098
    %v1414 = vunpack.c.l.b16 %v1099
    %v1415 = vunpack.c.h.b16 %v1099
    %v1416 = vunpack.c.l.b16 %v1100
    %v1417 = vunpack.c.h.b16 %v1100
    %v1418 = vunpack.c.l.b16 %v1101
    %v1419 = vunpack.c.h.b16 %v1101
    %v1420 = vunpack.c.l.b16 %v1102
    %v1421 = vunpack.c.h.b16 %v1102
    %v1422 = vunpack.c.l.b16 %v1103
    %v1423 = vunpack.c.h.b16 %v1103
    %v1424 = vunpack.c.l.b16 %v1104
    %v1425 = vunpack.c.h.b16 %v1104
    %v1426 = vunpack.c.l.b16 %v1105
    %v1427 = vunpack.c.h.b16 %v1105
    %v1428 = vunpack.c.l.b16 %v1106
    %v1429 = vunpack.c.h.b16 %v1106
    %v1430 = vunpack.c.l.b16 %v1107
    %v1431 = vunpack.c.h.b16 %v1107
    %v1432 = vunpack.c.l.b16 %v1108
    %v1433 = vunpack.c.h.b16 %v1108
    %v1434 = vunpack.c.l.b16 %v1109
    %v1435 = vunpack.c.h.b16 %v1109
    %v1436 = vunpack.c.l.b16 %v1110
    %v1437 = vunpack.c.h.b16 %v1110
    %v1438 = vunpack.c.l.b16 %v1111
    %v1439 = vunpack.c.h.b16 %v1111
    %v1440 = vunpack.c.l.b16 %v1112
    %v1441 = vunpack.c.h.b16 %v1112
    %v1442 = vunpack.c.l.b16 %v1113
    %v1443 = vunpack.c.h.b16 %v1113
    %v1444 = vunpack.c.l.b16 %v1114
    %v1445 = vunpack.c.h.b16 %v1114
    %v1446 = vunpack.c.l.b16 %v1115
    %v1447 = vunpack.c.h.b16 %v1115
    %v1448 = vunpack.c.l.b16 %v1116
    %v1449 = vunpack.c.h.b16 %v1116
    %v1450 = vunpack.c.l.b16 %v1117
    %v1451 = vunpack.c.h.b16 %v1117
    %v1452 = vunpack.c.l.b16 %v1118
    %v1453 = vunpack.c.h.b16 %v1118
    %v1454 = vunpack.c.l.b16 %v1119
    %v1455 = vunpack.c.h.b16 %v1119
    %v1456 = vunpack.c.l.b16 %v1120
    %v1457 = vunpack.c.h.b16 %v1120
    %v1458 = vunpack.c.l.b16 %v1121
    %v1459 = vunpack.c.h.b16 %v1121
    %v1460 = vunpack.c.l.b16 %v1122
    %v1461 = vunpack.c.h.b16 %v1122
    %v1462 = vunpack.c.l.b16 %v1123
    %v1463 = vunpack.c.h.b16 %v1123
    %v1464 = vunpack.c.l.b16 %v1124
    %v1465 = vunpack.c.h.b16 %v1124
    %v1466 = vpack.c.b16 %v1406, %v1402
    %v1467 = vpack.c.b16 %v1407, %v1403
    %v1468 = vpack.c.b16 %v1408, %v1404
    %v1469 = vpack.c.b16 %v1409, %v1405
    %v1470 = vpack.c.b16 %v1414, %v1410
    %v1471 = vpack.c.b16 %v1415, %v1411
    %v1472 = vpack.c.b16 %v1416, %v1412
    %v1473 = vpack.c.b16 %v1417, %v1413
    %v1474 = vpack.c.b16 %v1422, %v1418
    %v1475 = vpack.c.b16 %v1423, %v1419
    %v1476 = vpack.c.b16 %v1424, %v1420
    %v1477 = vpack.c.b16 %v1425, %v1421
    %v1478 = vpack.c.b16 %v1430, %v1426
    %v1479 = vpack.c.b16 %v1431, %v1427
    %v1480 = vpack.c.b16 %v1432, %v1428
    %v1481 = vpack.c.b16 %v1433, %v1429
    %v1482 = vpack.c.b16 %v1438, %v1434
    %v1483 = vpack.c.b16 %v1439, %v1435
    %v1484 = vpack.c.b16 %v1440, %v1436
    %v1485 = vpack.c.b16 %v1441, %v1437
    %v1486 = vpack.c.b16 %v1446, %v1442
    %v1487 = vpack.c.b16 %v1447, %v1443
    %v1488 = vpack.c.b16 %v1448, %v1444
    %v1489 = vpack.c.b16 %v1449, %v1445
    %v1490 = vpack.c.b16 %v1454, %v1450
    %v1491 = vpack.c.b16 %v1455, %v1451
    %v1492 = vpack.c.b16 %v1456, %v1452
    %v1493 = vpack.c.b16 %v1457, %v1453
    %v1494 = vpack.c.b16 %v1462, %v1458
    %v1495 = vpack.c.b16 %v1463, %v1459
    %v1496 = vpack.c.b16 %v1464, %v1460
    %v1497 = vpack.c.b16 %v1465, %v1461
    %1530 = vmatpush.bf16.msra.mxu0 %v1494
    %1531 = vmatpush.bf16.msra.mxu0 %v1490
    %1532 = vmatpush.bf16.msra.mxu0 %v1486
    %1533 = vmatpush.bf16.msra.mxu0 %v1482
    %1534 = vmatpush.bf16.msra.mxu0 %v1478
    %1535 = vmatpush.bf16.msra.mxu0 %v1474
    %1536 = vmatpush.bf16.msra.mxu0 %v1470
    %1537 = vmatpush.bf16.msra.mxu0 %v1466
    %1538 = vmatmul.bf16.gmra.mxu0 %v1092
    %v1539 = vpop.f32.mrf.mxu0
    %v1540 = vadd.f32 %v1328, %v1539
    %v1541 = vpop.f32.mrf.mxu0
    %1542 = vdwg.mxu0
    %1543 = vmatpush.bf16.msra.mxu0 %v1495
    %1544 = vmatpush.bf16.msra.mxu0 %v1491
    %1545 = vmatpush.bf16.msra.mxu0 %v1487
    %1546 = vmatpush.bf16.msra.mxu0 %v1483
    %1547 = vmatpush.bf16.msra.mxu0 %v1479
    %1548 = vmatpush.bf16.msra.mxu0 %v1475
    %1549 = vmatpush.bf16.msra.mxu0 %v1471
    %1550 = vmatpush.bf16.msra.mxu0 %v1467
    %1551 = vmatmul.bf16.gmra.mxu0 %v1092
    %v1552 = vpop.f32.mrf.mxu0
    %v1553 = vadd.f32 %v1341, %v1552
    %v1554 = vpop.f32.mrf.mxu0
    %1555 = vdwg.mxu0
    %1556 = vmatpush.bf16.msra.mxu0 %v1496
    %1557 = vmatpush.bf16.msra.mxu0 %v1492
    %1558 = vmatpush.bf16.msra.mxu0 %v1488
    %1559 = vmatpush.bf16.msra.mxu0 %v1484
    %1560 = vmatpush.bf16.msra.mxu0 %v1480
    %1561 = vmatpush.bf16.msra.mxu0 %v1476
    %1562 = vmatpush.bf16.msra.mxu0 %v1472
    %1563 = vmatpush.bf16.msra.mxu0 %v1468
    %1564 = vmatmul.bf16.gmra.mxu0 %v1092
    %v1565 = vpop.f32.mrf.mxu0
    %v1566 = vadd.f32 %v1354, %v1565
    %v1567 = vpop.f32.mrf.mxu0
    %1568 = vdwg.mxu0
    %1569 = vmatpush.bf16.msra.mxu0 %v1497
    %1570 = vmatpush.bf16.msra.mxu0 %v1493
    %1571 = vmatpush.bf16.msra.mxu0 %v1489
    %1572 = vmatpush.bf16.msra.mxu0 %v1485
    %1573 = vmatpush.bf16.msra.mxu0 %v1481
    %1574 = vmatpush.bf16.msra.mxu0 %v1477
    %1575 = vmatpush.bf16.msra.mxu0 %v1473
    %1576 = vmatpush.bf16.msra.mxu0 %v1469
    %1577 = vmatmul.bf16.gmra.mxu0 %v1092
    %v1578 = vpop.f32.mrf.mxu0
    %v1579 = vadd.f32 %v1367, %v1578
    %v1580 = vpop.f32.mrf.mxu0
    %1581 = vdwg.mxu0
    %v1582 = vadd.f32 %v1540, %v1018
    %v1583 = vadd.f32 %v1553, %v1031
    %v1584 = vadd.f32 %v1566, %v1044
    %v1585 = vadd.f32 %v1579, %v1057
    %v1586 = vxor.u32 %v1582, 2147483648
    %v1587 = vmul.f32 %v1586, 1.442695
    %v1588 = vpow.pop %v1587
    %v1589 = vadd.f32 %v1588, 1.0
    %v1590 = vrcp.pop %v1589
    %v1591 = vmul.f32 %v1589, %v1590
    %v1592 = vsub.f32 1.0, %v1591
    %v1593 = vmul.f32 %v1590, %v1592
    %v1594 = vadd.f32 %v1590, %v1593
    %vm1595 = vweird.f32 %v1589
    %vm1596 = vweird.f32 %v1590
    %vm1597 = vmor %vm1595, %vm1596
    %v1598 = vsel %vm1597, %v1590, %v1594
    %v1599 = vand.u32 2147483647, %v1589
    %vm1600 = vcmp.eq.f32.partialorder %v1599, 8.507059e+37
    %v1601 = vand.u32 %v1589, 2147483648
    %v1602 = vor.u32 1.1754944e-38, %v1601
    %v1603 = vsel %vm1600, %v1602, %v1598
    %v1604 = vmul.f32 1.0, %v1603
    %v1605 = vxor.u32 %v1583, 2147483648
    %v1606 = vmul.f32 %v1605, 1.442695
    %v1607 = vpow.pop %v1606
    %v1608 = vadd.f32 %v1607, 1.0
    %v1609 = vrcp.pop %v1608
    %v1610 = vmul.f32 %v1608, %v1609
    %v1611 = vsub.f32 1.0, %v1610
    %v1612 = vmul.f32 %v1609, %v1611
    %v1613 = vadd.f32 %v1609, %v1612
    %vm1614 = vweird.f32 %v1608
    %vm1615 = vweird.f32 %v1609
    %vm1616 = vmor %vm1614, %vm1615
    %v1617 = vsel %vm1616, %v1609, %v1613
    %v1618 = vand.u32 2147483647, %v1608
    %vm1619 = vcmp.eq.f32.partialorder %v1618, 8.507059e+37
    %v1620 = vand.u32 %v1608, 2147483648
    %v1621 = vor.u32 1.1754944e-38, %v1620
    %v1622 = vsel %vm1619, %v1621, %v1617
    %v1623 = vmul.f32 1.0, %v1622
    %v1624 = vtanh.pop %v1584
    %v1625 = vxor.u32 %v1585, 2147483648
    %v1626 = vmul.f32 %v1625, 1.442695
    %v1627 = vpow.pop %v1626
    %v1628 = vadd.f32 %v1627, 1.0
    %v1629 = vrcp.pop %v1628
    %v1630 = vmul.f32 %v1628, %v1629
    %v1631 = vsub.f32 1.0, %v1630
    %v1632 = vmul.f32 %v1629, %v1631
    %v1633 = vadd.f32 %v1629, %v1632
    %vm1634 = vweird.f32 %v1628
    %vm1635 = vweird.f32 %v1629
    %vm1636 = vmor %vm1634, %vm1635
    %v1637 = vsel %vm1636, %v1629, %v1633
    %v1638 = vand.u32 2147483647, %v1628
    %vm1639 = vcmp.eq.f32.partialorder %v1638, 8.507059e+37
    %v1640 = vand.u32 %v1628, 2147483648
    %v1641 = vor.u32 1.1754944e-38, %v1640
    %v1642 = vsel %vm1639, %v1641, %v1637
    %v1643 = vmul.f32 1.0, %v1642
    %v1644 = vmul.f32 %v1623, %v1078
    %v1645 = vmul.f32 %v1604, %v1624
    %v1646 = vadd.f32 %v1644, %v1645
    %v1647 = vtanh.pop %v1646
    %v1648 = vmul.f32 %v1643, %v1647
    %v1649 = vld [vmem:[#allocation3] sm:$0xf]
    %v1650 = vld [vmem:[#allocation3 + $0x4] sm:$0xf]
    %v1651 = vld [vmem:[#allocation3 + $0x8] sm:$0xf]
    %v1652 = vld [vmem:[#allocation3 + $0xc] sm:$0xf]
    %v1653 = vld [vmem:[#allocation3 + $0x10] sm:$0xf]
    %v1654 = vld [vmem:[#allocation3 + $0x14] sm:$0xf]
    %v1655 = vld [vmem:[#allocation3 + $0x18] sm:$0xf]
    %v1656 = vld [vmem:[#allocation3 + $0x1c] sm:$0xf]
    %v1658 = vrot.slane %v1648, 1
    %v1659 = vrot.slane %v1648, 2
    %v1660 = vrot.slane %v1648, 3
    %v1661 = vrot.slane %v1648, 4
    %v1662 = vrot.slane %v1648, 5
    %v1663 = vrot.slane %v1648, 6
    %v1664 = vrot.slane %v1648, 7
    %v1672 = vpack.c.bf16 %v1648, %v1648
    %v1673 = vpack.c.bf16 %v1658, %v1658
    %v1674 = vpack.c.bf16 %v1659, %v1659
    %v1675 = vpack.c.bf16 %v1660, %v1660
    %v1676 = vpack.c.bf16 %v1661, %v1661
    %v1677 = vpack.c.bf16 %v1662, %v1662
    %v1678 = vpack.c.bf16 %v1663, %v1663
    %v1679 = vpack.c.bf16 %v1664, %v1664
    %1680 = vmatpush.bf16.xpose.msra.mxu0 0
    %1681 = vmatpush.bf16.xpose.msra.mxu0 0
    %1682 = vmatpush.bf16.xpose.msra.mxu0 0
    %1683 = vmatpush.bf16.xpose.msra.mxu0 0
    %1684 = vmatpush.bf16.xpose.msra.mxu0 0
    %1685 = vmatpush.bf16.xpose.msra.mxu0 0
    %1686 = vmatpush.bf16.xpose.msra.mxu0 0
    %1687 = vmatpush.bf16.xpose.msra.mxu0 %v1649
    %1688 = vmatmul.bf16.gmra.mxu0 %v1672
    %v1689 = vpop.f32.mrf.mxu0
    %v1690 = vadd.f32 %v796, %v1689
    %v1691 = vpop.f32.mrf.mxu0
    %1692 = vdwg.mxu0
    %1693 = vmatpush.bf16.xpose.msra.mxu0 0
    %1694 = vmatpush.bf16.xpose.msra.mxu0 0
    %1695 = vmatpush.bf16.xpose.msra.mxu0 0
    %1696 = vmatpush.bf16.xpose.msra.mxu0 0
    %1697 = vmatpush.bf16.xpose.msra.mxu0 0
    %1698 = vmatpush.bf16.xpose.msra.mxu0 0
    %1699 = vmatpush.bf16.xpose.msra.mxu0 0
    %1700 = vmatpush.bf16.xpose.msra.mxu0 %v1650
    %1701 = vmatmul.bf16.gmra.mxu0 %v1673
    %v1702 = vpop.f32.mrf.mxu0
    %v1703 = vadd.f32 %v797, %v1702
    %v1704 = vpop.f32.mrf.mxu0
    %1705 = vdwg.mxu0
    %1706 = vmatpush.bf16.xpose.msra.mxu0 0
    %1707 = vmatpush.bf16.xpose.msra.mxu0 0
    %1708 = vmatpush.bf16.xpose.msra.mxu0 0
    %1709 = vmatpush.bf16.xpose.msra.mxu0 0
    %1710 = vmatpush.bf16.xpose.msra.mxu0 0
    %1711 = vmatpush.bf16.xpose.msra.mxu0 0
    %1712 = vmatpush.bf16.xpose.msra.mxu0 0
    %1713 = vmatpush.bf16.xpose.msra.mxu0 %v1651
    %1714 = vmatmul.bf16.gmra.mxu0 %v1674
    %v1715 = vpop.f32.mrf.mxu0
    %v1716 = vadd.f32 %v798, %v1715
    %v1717 = vpop.f32.mrf.mxu0
    %1718 = vdwg.mxu0
    %1719 = vmatpush.bf16.xpose.msra.mxu0 0
    %1720 = vmatpush.bf16.xpose.msra.mxu0 0
    %1721 = vmatpush.bf16.xpose.msra.mxu0 0
    %1722 = vmatpush.bf16.xpose.msra.mxu0 0
    %1723 = vmatpush.bf16.xpose.msra.mxu0 0
    %1724 = vmatpush.bf16.xpose.msra.mxu0 0
    %1725 = vmatpush.bf16.xpose.msra.mxu0 0
    %1726 = vmatpush.bf16.xpose.msra.mxu0 %v1652
    %1727 = vmatmul.bf16.gmra.mxu0 %v1675
    %v1728 = vpop.f32.mrf.mxu0
    %v1729 = vadd.f32 %v799, %v1728
    %v1730 = vpop.f32.mrf.mxu0
    %1731 = vdwg.mxu0
    %1732 = vmatpush.bf16.xpose.msra.mxu0 0
    %1733 = vmatpush.bf16.xpose.msra.mxu0 0
    %1734 = vmatpush.bf16.xpose.msra.mxu0 0
    %1735 = vmatpush.bf16.xpose.msra.mxu0 0
    %1736 = vmatpush.bf16.xpose.msra.mxu0 0
    %1737 = vmatpush.bf16.xpose.msra.mxu0 0
    %1738 = vmatpush.bf16.xpose.msra.mxu0 0
    %1739 = vmatpush.bf16.xpose.msra.mxu0 %v1653
    %1740 = vmatmul.bf16.gmra.mxu0 %v1676
    %v1741 = vpop.f32.mrf.mxu0
    %v1742 = vadd.f32 %v800, %v1741
    %v1743 = vpop.f32.mrf.mxu0
    %1744 = vdwg.mxu0
    %1745 = vmatpush.bf16.xpose.msra.mxu0 0
    %1746 = vmatpush.bf16.xpose.msra.mxu0 0
    %1747 = vmatpush.bf16.xpose.msra.mxu0 0
    %1748 = vmatpush.bf16.xpose.msra.mxu0 0
    %1749 = vmatpush.bf16.xpose.msra.mxu0 0
    %1750 = vmatpush.bf16.xpose.msra.mxu0 0
    %1751 = vmatpush.bf16.xpose.msra.mxu0 0
    %1752 = vmatpush.bf16.xpose.msra.mxu0 %v1654
    %1753 = vmatmul.bf16.gmra.mxu0 %v1677
    %v1754 = vpop.f32.mrf.mxu0
    %v1755 = vadd.f32 %v801, %v1754
    %v1756 = vpop.f32.mrf.mxu0
    %1757 = vdwg.mxu0
    %1758 = vmatpush.bf16.xpose.msra.mxu0 0
    %1759 = vmatpush.bf16.xpose.msra.mxu0 0
    %1760 = vmatpush.bf16.xpose.msra.mxu0 0
    %1761 = vmatpush.bf16.xpose.msra.mxu0 0
    %1762 = vmatpush.bf16.xpose.msra.mxu0 0
    %1763 = vmatpush.bf16.xpose.msra.mxu0 0
    %1764 = vmatpush.bf16.xpose.msra.mxu0 0
    %1765 = vmatpush.bf16.xpose.msra.mxu0 %v1655
    %1766 = vmatmul.bf16.gmra.mxu0 %v1678
    %v1767 = vpop.f32.mrf.mxu0
    %v1768 = vadd.f32 %v802, %v1767
    %v1769 = vpop.f32.mrf.mxu0
    %1770 = vdwg.mxu0
    %1771 = vmatpush.bf16.xpose.msra.mxu0 0
    %1772 = vmatpush.bf16.xpose.msra.mxu0 0
    %1773 = vmatpush.bf16.xpose.msra.mxu0 0
    %1774 = vmatpush.bf16.xpose.msra.mxu0 0
    %1775 = vmatpush.bf16.xpose.msra.mxu0 0
    %1776 = vmatpush.bf16.xpose.msra.mxu0 0
    %1777 = vmatpush.bf16.xpose.msra.mxu0 0
    %1778 = vmatpush.bf16.xpose.msra.mxu0 %v1656
    %1779 = vmatmul.bf16.gmra.mxu0 %v1679
    %v1780 = vpop.f32.mrf.mxu0
    %v1781 = vadd.f32 %v803, %v1780
    %v1782 = vpop.f32.mrf.mxu0
    %1783 = vdwg.mxu0
    %vm1784 = vcmask 57344
    %v1785 = vsel %vm1784, %v1690, -inf
    %1786 = vmax.xlane.f32.xlu0 %v1785
    %v1787 = vpop.xlane.xlu0 %1786
    %v1788 = vsel %vm1784, %v1703, -inf
    %1789 = vmax.xlane.f32.xlu0 %v1788
    %v1790 = vpop.xlane.xlu0 %1789
    %v1791 = vsel %vm1784, %v1716, -inf
    %1792 = vmax.xlane.f32.xlu0 %v1791
    %v1793 = vpop.xlane.xlu0 %1792
    %v1794 = vsel %vm1784, %v1729, -inf
    %1795 = vmax.xlane.f32.xlu0 %v1794
    %v1796 = vpop.xlane.xlu0 %1795
    %v1797 = vsel %vm1784, %v1742, -inf
    %1798 = vmax.xlane.f32.xlu0 %v1797
    %v1799 = vpop.xlane.xlu0 %1798
    %v1800 = vsel %vm1784, %v1755, -inf
    %1801 = vmax.xlane.f32.xlu0 %v1800
    %v1802 = vpop.xlane.xlu0 %1801
    %v1803 = vsel %vm1784, %v1768, -inf
    %1804 = vmax.xlane.f32.xlu0 %v1803
    %v1805 = vpop.xlane.xlu0 %1804
    %v1806 = vsel %vm1784, %v1781, -inf
    %1807 = vmax.xlane.f32.xlu0 %v1806
    %v1808 = vpop.xlane.xlu0 %1807
    %v1809 = vsub.f32 %v1690, %v1787
    %v1810 = vsub.f32 %v1703, %v1790
    %v1811 = vsub.f32 %v1716, %v1793
    %v1812 = vsub.f32 %v1729, %v1796
    %v1813 = vsub.f32 %v1742, %v1799
    %v1814 = vsub.f32 %v1755, %v1802
    %v1815 = vsub.f32 %v1768, %v1805
    %v1816 = vsub.f32 %v1781, %v1808
    %v1817 = vmul.f32 %v1809, 1.442695
    %v1818 = vpow.pop %v1817
    %v1819 = vmul.f32 %v1810, 1.442695
    %v1820 = vpow.pop %v1819
    %v1821 = vmul.f32 %v1811, 1.442695
    %v1822 = vpow.pop %v1821
    %v1823 = vmul.f32 %v1812, 1.442695
    %v1824 = vpow.pop %v1823
    %v1825 = vmul.f32 %v1813, 1.442695
    %v1826 = vpow.pop %v1825
    %v1827 = vmul.f32 %v1814, 1.442695
    %v1828 = vpow.pop %v1827
    %v1829 = vmul.f32 %v1815, 1.442695
    %v1830 = vpow.pop %v1829
    %v1831 = vmul.f32 %v1816, 1.442695
    %v1832 = vpow.pop %v1831
    %v1833 = vsel %vm1784, %v1818, 0.0
    %1834 = vadd.xlane.f32.xlu0 %v1833
    %v1835 = vpop.xlane.xlu0 %1834
    %v1836 = vsel %vm1784, %v1820, 0.0
    %1837 = vadd.xlane.f32.xlu0 %v1836
    %v1838 = vpop.xlane.xlu0 %1837
    %v1839 = vsel %vm1784, %v1822, 0.0
    %1840 = vadd.xlane.f32.xlu0 %v1839
    %v1841 = vpop.xlane.xlu0 %1840
    %v1842 = vsel %vm1784, %v1824, 0.0
    %1843 = vadd.xlane.f32.xlu0 %v1842
    %v1844 = vpop.xlane.xlu0 %1843
    %v1845 = vsel %vm1784, %v1826, 0.0
    %1846 = vadd.xlane.f32.xlu0 %v1845
    %v1847 = vpop.xlane.xlu0 %1846
    %v1848 = vsel %vm1784, %v1828, 0.0
    %1849 = vadd.xlane.f32.xlu0 %v1848
    %v1850 = vpop.xlane.xlu0 %1849
    %v1851 = vsel %vm1784, %v1830, 0.0
    %1852 = vadd.xlane.f32.xlu0 %v1851
    %v1853 = vpop.xlane.xlu0 %1852
    %v1854 = vsel %vm1784, %v1832, 0.0
    %1855 = vadd.xlane.f32.xlu0 %v1854
    %v1856 = vpop.xlane.xlu0 %1855
    %v1857 = vrcp.pop %v1835
    %v1858 = vrcp.pop %v1838
    %v1859 = vrcp.pop %v1841
    %v1860 = vrcp.pop %v1844
    %v1861 = vrcp.pop %v1847
    %v1862 = vrcp.pop %v1850
    %v1863 = vrcp.pop %v1853
    %v1864 = vrcp.pop %v1856
    %v1865 = vmul.f32 %v1818, %v1857
    %v1866 = vmul.f32 %v1820, %v1858
    %v1867 = vmul.f32 %v1822, %v1859
    %v1868 = vmul.f32 %v1824, %v1860
    %v1869 = vmul.f32 %v1826, %v1861
    %v1870 = vmul.f32 %v1828, %v1862
    %v1871 = vmul.f32 %v1830, %v1863
    %v1872 = vmul.f32 %v1832, %v1864
    %v1873 = vpack.c.bf16 %v1865, %v1865
    %v1874 = vpack.c.bf16 %v1866, %v1866
    %v1875 = vpack.c.bf16 %v1867, %v1867
    %v1876 = vpack.c.bf16 %v1868, %v1868
    %v1877 = vpack.c.bf16 %v1869, %v1869
    %v1878 = vpack.c.bf16 %v1870, %v1870
    %v1879 = vpack.c.bf16 %v1871, %v1871
    %v1880 = vpack.c.bf16 %v1872, %v1872
    %vm1881 = vcmask 64512
    %v1883 = vsel %vm1881, %v1873, 0
    %vm1885 = vcmask 1043456
    %v1887 = vsel %vm1885, %v1649, 0
    %1889 = vmatpush.bf16.msra.mxu0 0
    %1890 = vmatpush.bf16.msra.mxu0 0
    %1891 = vmatpush.bf16.msra.mxu0 0
    %1892 = vmatpush.bf16.msra.mxu0 0
    %1893 = vmatpush.bf16.msra.mxu0 0
    %1894 = vmatpush.bf16.msra.mxu0 0
    %1895 = vmatpush.bf16.msra.mxu0 0
    %1896 = vmatpush.bf16.msra.mxu0 %v1887
    %1897 = vmatmul.bf16.gmra.mxu0 %v1883
    %v1898 = vpop.f32.mrf.mxu0
    %v1899 = vadd.f32 0.0, %v1898
    %v1900 = vpop.f32.mrf.mxu0
    %1901 = vdwg.mxu0
    %v1903 = vsel %vm1881, %v1874, 0
    %v1906 = vsel %vm1885, %v1650, 0
    %1908 = vmatpush.bf16.msra.mxu0 0
    %1909 = vmatpush.bf16.msra.mxu0 0
    %1910 = vmatpush.bf16.msra.mxu0 0
    %1911 = vmatpush.bf16.msra.mxu0 0
    %1912 = vmatpush.bf16.msra.mxu0 0
    %1913 = vmatpush.bf16.msra.mxu0 0
    %1914 = vmatpush.bf16.msra.mxu0 0
    %1915 = vmatpush.bf16.msra.mxu0 %v1906
    %1916 = vmatmul.bf16.gmra.mxu0 %v1903
    %v1917 = vpop.f32.mrf.mxu0
    %v1918 = vadd.f32 0.0, %v1917
    %v1919 = vpop.f32.mrf.mxu0
    %1920 = vdwg.mxu0
    %v1922 = vsel %vm1881, %v1875, 0
    %v1925 = vsel %vm1885, %v1651, 0
    %1927 = vmatpush.bf16.msra.mxu0 0
    %1928 = vmatpush.bf16.msra.mxu0 0
    %1929 = vmatpush.bf16.msra.mxu0 0
    %1930 = vmatpush.bf16.msra.mxu0 0
    %1931 = vmatpush.bf16.msra.mxu0 0
    %1932 = vmatpush.bf16.msra.mxu0 0
    %1933 = vmatpush.bf16.msra.mxu0 0
    %1934 = vmatpush.bf16.msra.mxu0 %v1925
    %1935 = vmatmul.bf16.gmra.mxu0 %v1922
    %v1936 = vpop.f32.mrf.mxu0
    %v1937 = vadd.f32 0.0, %v1936
    %v1938 = vpop.f32.mrf.mxu0
    %1939 = vdwg.mxu0
    %v1941 = vsel %vm1881, %v1876, 0
    %v1944 = vsel %vm1885, %v1652, 0
    %1946 = vmatpush.bf16.msra.mxu0 0
    %1947 = vmatpush.bf16.msra.mxu0 0
    %1948 = vmatpush.bf16.msra.mxu0 0
    %1949 = vmatpush.bf16.msra.mxu0 0
    %1950 = vmatpush.bf16.msra.mxu0 0
    %1951 = vmatpush.bf16.msra.mxu0 0
    %1952 = vmatpush.bf16.msra.mxu0 0
    %1953 = vmatpush.bf16.msra.mxu0 %v1944
    %1954 = vmatmul.bf16.gmra.mxu0 %v1941
    %v1955 = vpop.f32.mrf.mxu0
    %v1956 = vadd.f32 0.0, %v1955
    %v1957 = vpop.f32.mrf.mxu0
    %1958 = vdwg.mxu0
    %v1960 = vsel %vm1881, %v1877, 0
    %v1963 = vsel %vm1885, %v1653, 0
    %1965 = vmatpush.bf16.msra.mxu0 0
    %1966 = vmatpush.bf16.msra.mxu0 0
    %1967 = vmatpush.bf16.msra.mxu0 0
    %1968 = vmatpush.bf16.msra.mxu0 0
    %1969 = vmatpush.bf16.msra.mxu0 0
    %1970 = vmatpush.bf16.msra.mxu0 0
    %1971 = vmatpush.bf16.msra.mxu0 0
    %1972 = vmatpush.bf16.msra.mxu0 %v1963
    %1973 = vmatmul.bf16.gmra.mxu0 %v1960
    %v1974 = vpop.f32.mrf.mxu0
    %v1975 = vadd.f32 0.0, %v1974
    %v1976 = vpop.f32.mrf.mxu0
    %1977 = vdwg.mxu0
    %v1979 = vsel %vm1881, %v1878, 0
    %v1982 = vsel %vm1885, %v1654, 0
    %1984 = vmatpush.bf16.msra.mxu0 0
    %1985 = vmatpush.bf16.msra.mxu0 0
    %1986 = vmatpush.bf16.msra.mxu0 0
    %1987 = vmatpush.bf16.msra.mxu0 0
    %1988 = vmatpush.bf16.msra.mxu0 0
    %1989 = vmatpush.bf16.msra.mxu0 0
    %1990 = vmatpush.bf16.msra.mxu0 0
    %1991 = vmatpush.bf16.msra.mxu0 %v1982
    %1992 = vmatmul.bf16.gmra.mxu0 %v1979
    %v1993 = vpop.f32.mrf.mxu0
    %v1994 = vadd.f32 0.0, %v1993
    %v1995 = vpop.f32.mrf.mxu0
    %1996 = vdwg.mxu0
    %v1998 = vsel %vm1881, %v1879, 0
    %v2001 = vsel %vm1885, %v1655, 0
    %2003 = vmatpush.bf16.msra.mxu0 0
    %2004 = vmatpush.bf16.msra.mxu0 0
    %2005 = vmatpush.bf16.msra.mxu0 0
    %2006 = vmatpush.bf16.msra.mxu0 0
    %2007 = vmatpush.bf16.msra.mxu0 0
    %2008 = vmatpush.bf16.msra.mxu0 0
    %2009 = vmatpush.bf16.msra.mxu0 0
    %2010 = vmatpush.bf16.msra.mxu0 %v2001
    %2011 = vmatmul.bf16.gmra.mxu0 %v1998
    %v2012 = vpop.f32.mrf.mxu0
    %v2013 = vadd.f32 0.0, %v2012
    %v2014 = vpop.f32.mrf.mxu0
    %2015 = vdwg.mxu0
    %v2017 = vsel %vm1881, %v1880, 0
    %v2020 = vsel %vm1885, %v1656, 0
    %2022 = vmatpush.bf16.msra.mxu0 0
    %2023 = vmatpush.bf16.msra.mxu0 0
    %2024 = vmatpush.bf16.msra.mxu0 0
    %2025 = vmatpush.bf16.msra.mxu0 0
    %2026 = vmatpush.bf16.msra.mxu0 0
    %2027 = vmatpush.bf16.msra.mxu0 0
    %2028 = vmatpush.bf16.msra.mxu0 0
    %2029 = vmatpush.bf16.msra.mxu0 %v2020
    %2030 = vmatmul.bf16.gmra.mxu0 %v2017
    %v2031 = vpop.f32.mrf.mxu0
    %v2032 = vadd.f32 0.0, %v2031
    %v2033 = vpop.f32.mrf.mxu0
    %2034 = vdwg.mxu0
    %v2035 = vld [vmem:[%s13] sm:$0xf]
    %v2036 = vld [vmem:[%s13 + $0x4] sm:$0xf]
    %v2037 = vld [vmem:[%s13 + $0x8] sm:$0xf]
    %v2038 = vld [vmem:[%s13 + $0xc] sm:$0xf]
    %v2039 = vld [vmem:[%s13 + $0x10] sm:$0xf]
    %v2040 = vld [vmem:[%s13 + $0x14] sm:$0xf]
    %v2041 = vld [vmem:[%s13 + $0x18] sm:$0xf]
    %v2042 = vld [vmem:[%s13 + $0x1c] sm:$0xf]
    %v2043 = vld [vmem:[%s13 + $0x20] sm:$0xf]
    %v2044 = vld [vmem:[%s13 + $0x24] sm:$0xf]
    %v2045 = vld [vmem:[%s13 + $0x28] sm:$0xf]
    %v2046 = vld [vmem:[%s13 + $0x2c] sm:$0xf]
    %v2047 = vld [vmem:[%s13 + $0x30] sm:$0xf]
    %v2048 = vld [vmem:[%s13 + $0x34] sm:$0xf]
    %v2049 = vld [vmem:[%s13 + $0x38] sm:$0xf]
    %v2050 = vld [vmem:[%s13 + $0x3c] sm:$0xf]
    %v2051 = vpack.c.bf16 %v1899, %v1899
    %v2052 = vpack.c.bf16 %v1918, %v1918
    %v2053 = vpack.c.bf16 %v1937, %v1937
    %v2054 = vpack.c.bf16 %v1956, %v1956
    %v2055 = vpack.c.bf16 %v1975, %v1975
    %v2056 = vpack.c.bf16 %v1994, %v1994
    %v2057 = vpack.c.bf16 %v2013, %v2013
    %v2058 = vpack.c.bf16 %v2032, %v2032
    %v2059 = vld [vmem:[%s14] sm:$0xf]
    %v2060 = vld [vmem:[%s14 + $0x4] sm:$0xf]
    %v2061 = vld [vmem:[%s14 + $0x8] sm:$0xf]
    %v2062 = vld [vmem:[%s14 + $0xc] sm:$0xf]
    %v2063 = vld [vmem:[%s14 + $0x10] sm:$0xf]
    %v2064 = vld [vmem:[%s14 + $0x14] sm:$0xf]
    %v2065 = vld [vmem:[%s14 + $0x18] sm:$0xf]
    %v2066 = vld [vmem:[%s14 + $0x1c] sm:$0xf]
    %v2067 = vld [vmem:[%s14 + $0x20] sm:$0xf]
    %v2068 = vld [vmem:[%s14 + $0x24] sm:$0xf]
    %v2069 = vld [vmem:[%s14 + $0x28] sm:$0xf]
    %v2070 = vld [vmem:[%s14 + $0x2c] sm:$0xf]
    %v2071 = vld [vmem:[%s14 + $0x30] sm:$0xf]
    %v2072 = vld [vmem:[%s14 + $0x34] sm:$0xf]
    %v2073 = vld [vmem:[%s14 + $0x38] sm:$0xf]
    %v2074 = vld [vmem:[%s14 + $0x3c] sm:$0xf]
    %v2083 = vunpack.c.l.b16 %v2051
    %v2084 = vunpack.c.l.b16 %v2052
    %v2085 = vunpack.c.l.b16 %v2053
    %v2086 = vunpack.c.l.b16 %v2054
    %v2087 = vunpack.c.l.b16 %v2055
    %v2088 = vunpack.c.l.b16 %v2056
    %v2089 = vunpack.c.l.b16 %v2057
    %v2090 = vunpack.c.l.b16 %v2058
    %v2091 = vrot.slane %v2084, 7
    %vm2092 = vcmask 1041409
    %v2093 = vsel %vm2092, %v2091, %v2083
    %v2094 = vrot.slane %v2085, 6
    %vm2095 = vcmask 1042434
    %v2096 = vsel %vm2095, %v2094, %v2093
    %v2097 = vrot.slane %v2086, 5
    %vm2098 = vcmask 1043459
    %v2099 = vsel %vm2098, %v2097, %v2096
    %v2100 = vrot.slane %v2087, 4
    %vm2101 = vcmask 1044484
    %v2102 = vsel %vm2101, %v2100, %v2099
    %v2103 = vrot.slane %v2088, 3
    %vm2104 = vcmask 1045509
    %v2105 = vsel %vm2104, %v2103, %v2102
    %v2106 = vrot.slane %v2089, 2
    %vm2107 = vcmask 1046534
    %v2108 = vsel %vm2107, %v2106, %v2105
    %v2109 = vrot.slane %v2090, 1
    %vm2110 = vcmask 1047559
    %v2111 = vsel %vm2110, %v2109, %v2108
    %v2112 = vpack.c.b16 %v2111, %v2111
    %v2130 = vunpack.c.l.b16 %v2059
    %v2131 = vunpack.c.l.b16 %v2060
    %v2132 = vunpack.c.l.b16 %v2061
    %v2133 = vunpack.c.l.b16 %v2062
    %v2134 = vunpack.c.l.b16 %v2063
    %v2135 = vunpack.c.l.b16 %v2064
    %v2136 = vunpack.c.l.b16 %v2065
    %v2137 = vunpack.c.l.b16 %v2066
    %v2138 = vunpack.c.l.b16 %v2067
    %v2139 = vunpack.c.l.b16 %v2068
    %v2140 = vunpack.c.l.b16 %v2069
    %v2141 = vunpack.c.l.b16 %v2070
    %v2142 = vunpack.c.l.b16 %v2071
    %v2143 = vunpack.c.l.b16 %v2072
    %v2144 = vunpack.c.l.b16 %v2073
    %v2145 = vunpack.c.l.b16 %v2074
    %v2146 = vpack.c.b16 %v2131, %v2130
    %v2147 = vpack.c.b16 %v2133, %v2132
    %v2148 = vpack.c.b16 %v2135, %v2134
    %v2149 = vpack.c.b16 %v2137, %v2136
    %v2150 = vpack.c.b16 %v2139, %v2138
    %v2151 = vpack.c.b16 %v2141, %v2140
    %v2152 = vpack.c.b16 %v2143, %v2142
    %v2153 = vpack.c.b16 %v2145, %v2144
    %2162 = vmatpush.bf16.msra.mxu0 %v2153
    %2163 = vmatpush.bf16.msra.mxu0 %v2152
    %2164 = vmatpush.bf16.msra.mxu0 %v2151
    %2165 = vmatpush.bf16.msra.mxu0 %v2150
    %2166 = vmatpush.bf16.msra.mxu0 %v2149
    %2167 = vmatpush.bf16.msra.mxu0 %v2148
    %2168 = vmatpush.bf16.msra.mxu0 %v2147
    %2169 = vmatpush.bf16.msra.mxu0 %v2146
    %2170 = vmatmul.bf16.gmra.mxu0 %v2112
    %v2171 = vpop.f32.mrf.mxu0
    %v2172 = vadd.f32 0.0, %v2171
    %v2173 = vpop.f32.mrf.mxu0
    %2174 = vdwg.mxu0
    %v2191 = vunpack.c.l.b16 %v2035
    %v2192 = vunpack.c.l.b16 %v2036
    %v2193 = vunpack.c.l.b16 %v2037
    %v2194 = vunpack.c.l.b16 %v2038
    %v2195 = vunpack.c.l.b16 %v2039
    %v2196 = vunpack.c.l.b16 %v2040
    %v2197 = vunpack.c.l.b16 %v2041
    %v2198 = vunpack.c.l.b16 %v2042
    %v2199 = vunpack.c.l.b16 %v2043
    %v2200 = vunpack.c.l.b16 %v2044
    %v2201 = vunpack.c.l.b16 %v2045
    %v2202 = vunpack.c.l.b16 %v2046
    %v2203 = vunpack.c.l.b16 %v2047
    %v2204 = vunpack.c.l.b16 %v2048
    %v2205 = vunpack.c.l.b16 %v2049
    %v2206 = vunpack.c.l.b16 %v2050
    %v2207 = vpack.c.b16 %v2192, %v2191
    %v2208 = vpack.c.b16 %v2194, %v2193
    %v2209 = vpack.c.b16 %v2196, %v2195
    %v2210 = vpack.c.b16 %v2198, %v2197
    %v2211 = vpack.c.b16 %v2200, %v2199
    %v2212 = vpack.c.b16 %v2202, %v2201
    %v2213 = vpack.c.b16 %v2204, %v2203
    %v2214 = vpack.c.b16 %v2206, %v2205
    %2223 = vmatpush.bf16.msra.mxu0 %v2214
    %2224 = vmatpush.bf16.msra.mxu0 %v2213
    %2225 = vmatpush.bf16.msra.mxu0 %v2212
    %2226 = vmatpush.bf16.msra.mxu0 %v2211
    %2227 = vmatpush.bf16.msra.mxu0 %v2210
    %2228 = vmatpush.bf16.msra.mxu0 %v2209
    %2229 = vmatpush.bf16.msra.mxu0 %v2208
    %2230 = vmatpush.bf16.msra.mxu0 %v2207
    %2231 = vmatmul.bf16.gmra.mxu0 %v1672
    %v2232 = vpop.f32.mrf.mxu0
    %v2233 = vadd.f32 %v2172, %v2232
    %v2234 = vpop.f32.mrf.mxu0
    %2235 = vdwg.mxu0
    %v2236 = vadd.f32 %v2233, %v1062
    %v2237 = vtanh.pop %v2236
    %v2238 = vpack.c.bf16 %v2237, %v2237
    %v2239 = vld [vmem:[%s16] sm:$0xf]
    %v2240 = vld [vmem:[%s16 + $0x4] sm:$0xf]
    %v2241 = vld [vmem:[%s16 + $0x8] sm:$0xf]
    %v2242 = vld [vmem:[%s16 + $0xc] sm:$0xf]
    %v2243 = vld [vmem:[%s16 + $0x10] sm:$0xf]
    %v2244 = vld [vmem:[%s16 + $0x14] sm:$0xf]
    %v2245 = vld [vmem:[%s16 + $0x18] sm:$0xf]
    %v2246 = vld [vmem:[%s16 + $0x1c] sm:$0xf]
    %v2247 = vld [vmem:[%s16 + $0x20] sm:$0xf]
    %v2248 = vld [vmem:[%s16 + $0x24] sm:$0xf]
    %v2249 = vld [vmem:[%s16 + $0x28] sm:$0xf]
    %v2250 = vld [vmem:[%s16 + $0x2c] sm:$0xf]
    %v2251 = vld [vmem:[%s16 + $0x30] sm:$0xf]
    %v2252 = vld [vmem:[%s16 + $0x34] sm:$0xf]
    %v2253 = vld [vmem:[%s16 + $0x38] sm:$0xf]
    %v2254 = vld [vmem:[%s16 + $0x3c] sm:$0xf]
    %v2271 = vunpack.c.l.b16 %v2239
    %v2272 = vunpack.c.l.b16 %v2240
    %v2273 = vunpack.c.l.b16 %v2241
    %v2274 = vunpack.c.l.b16 %v2242
    %v2275 = vunpack.c.l.b16 %v2243
    %v2276 = vunpack.c.l.b16 %v2244
    %v2277 = vunpack.c.l.b16 %v2245
    %v2278 = vunpack.c.l.b16 %v2246
    %v2279 = vunpack.c.l.b16 %v2247
    %v2280 = vunpack.c.l.b16 %v2248
    %v2281 = vunpack.c.l.b16 %v2249
    %v2282 = vunpack.c.l.b16 %v2250
    %v2283 = vunpack.c.l.b16 %v2251
    %v2284 = vunpack.c.l.b16 %v2252
    %v2285 = vunpack.c.l.b16 %v2253
    %v2286 = vunpack.c.l.b16 %v2254
    %v2287 = vpack.c.b16 %v2272, %v2271
    %v2288 = vpack.c.b16 %v2274, %v2273
    %v2289 = vpack.c.b16 %v2276, %v2275
    %v2290 = vpack.c.b16 %v2278, %v2277
    %v2291 = vpack.c.b16 %v2280, %v2279
    %v2292 = vpack.c.b16 %v2282, %v2281
    %v2293 = vpack.c.b16 %v2284, %v2283
    %v2294 = vpack.c.b16 %v2286, %v2285
    %2303 = vmatpush.bf16.msra.mxu0 %v2294
    %2304 = vmatpush.bf16.msra.mxu0 %v2293
    %2305 = vmatpush.bf16.msra.mxu0 %v2292
    %2306 = vmatpush.bf16.msra.mxu0 %v2291
    %2307 = vmatpush.bf16.msra.mxu0 %v2290
    %2308 = vmatpush.bf16.msra.mxu0 %v2289
    %2309 = vmatpush.bf16.msra.mxu0 %v2288
    %2310 = vmatpush.bf16.msra.mxu0 %v2287
    %2311 = vmatmul.bf16.gmra.mxu0 %v2238
    %v2312 = vpop.f32.mrf.mxu0
    %v2313 = vadd.f32 %v1066, %v2312
    %v2314 = vpop.f32.mrf.mxu0
    %2315 = vdwg.mxu0
    %2316 = vmax.xlane.f32.xlu0 %v2313
    %v2317 = vpop.xlane.xlu0 %2316
    %v2318 = vsub.f32 %v2313, %v2317
    %v2319 = vmul.f32 %v2318, 1.442695
    %v2320 = vpow.pop %v2319
    %2321 = vadd.xlane.f32.xlu0 %v2320
    %v2322 = vpop.xlane.xlu0 %2321
    %v2323 = vrcp.pop %v2322
    %v2324 = vmul.f32 %v2322, %v2323
    %v2325 = vsub.f32 1.0, %v2324
    %v2326 = vmul.f32 %v2323, %v2325
    %v2327 = vadd.f32 %v2323, %v2326
    %vm2328 = vweird.f32 %v2322
    %vm2329 = vweird.f32 %v2323
    %vm2330 = vmor %vm2328, %vm2329
    %v2331 = vsel %vm2330, %v2323, %v2327
    %v2332 = vand.u32 2147483647, %v2322
    %vm2333 = vcmp.eq.f32.partialorder %v2332, 8.507059e+37
    %v2334 = vand.u32 %v2322, 2147483648
    %v2335 = vor.u32 1.1754944e-38, %v2334
    %v2336 = vsel %vm2333, %v2335, %v2331
    %v2337 = vmul.f32 %v2320, %v2336
    %p2338 = scmp.ge.s32.totalorder %s1072, 2
    // Predicated region
    $region88: #{seq2seq_forward.1} parent=84 // pred_check
      %p2339 = pneg %p2338
    $region89: #{seq2seq_forward.1} parent=84 // pred_check_branch
      %2341 = sbr.rel (%p2339) target = $region91
    $region90: #{seq2seq_forward.1} parent=84 // pred_region
      %s2342 = scalar_lea.sflag [#allocation5], %s1091
      %s2343 = smul.u32 8, 1
      %s2344 = sshll.u32 %s2343, 4
      %2345 = dma.done %s2342, %s2344
    $region91: #{seq2seq_forward.1} parent=84 // pred_fallthru
      _
    %s2346 = smul.u32 %s1091, 8
    %s2347 = scalar_lea.vmem [#allocation4], %s2346
    %2348 = vst [vmem:[%s2347] sm:$0xff] %v2337
    %s2349 = smul.u32 0, 8
    %s2350 = smul.u32 %s1072, 8
    %s2351 = sadd.s32 %s2349, %s2350
    %s2352 = scalar_lea.vmem %s18, %s2351
    %s2353 = scalar_lea.sflag [#allocation5], %s1091
    // Predicated region
    $region92: #{seq2seq_forward.1} parent=84 // pred_check
      _
    $region93: #{seq2seq_forward.1} parent=84 // pred_check_branch
      %2355 = sbr.rel (0) target = $region95
    $region94: #{seq2seq_forward.1} parent=84 // pred_region
      // Predicated region
      $region107: #{seq2seq_forward.1} parent=94 // pred_check
        _
      $region108: #{seq2seq_forward.1} parent=94 // pred_check_branch
        %2371 = sbr.rel (0) target = $region110
      $region109: #{seq2seq_forward.1} parent=94 // pred_region
        loop: start=0, step=1, limit=1
        $region111: #{seq2seq_forward.1} parent=109 // loop_pre_header
          _
        $region112: #{seq2seq_forward.1} parent=109 // loop_header
          %s2373 = sphi 0, %s2377
          %p2374 = scmp.ge.s32.totalorder %s2373, 1
          %s2378 = sphi %s2347, %s2347
          %s2379 = sphi %s2352, %s2352
        $region113: #{seq2seq_forward.1} parent=109 // loop_header_branch
          %2376 = sbr.rel (%p2374) target = $region117
        $region114: #{seq2seq_forward.1} parent=109 // loop_body
          %v2380 = vld [vmem:[%s2378] sm:$0xff]
          %2381 = vst [vmem:[%s2379] sm:$0xff] %v2380
        $region115: #{seq2seq_forward.1} parent=109 // loop_footer
          %s2377 = sadd.s32 1, %s2373
        $region116: #{seq2seq_forward.1} parent=109 // loop_footer_branch
          %2372 = sbr.rel target = $region112
        $region117: #{seq2seq_forward.1} parent=109 // loop_exit
          _
      $region110: #{seq2seq_forward.1} parent=94 // pred_fallthru
        _
      // Predicated region
      $region118: #{seq2seq_forward.1} parent=94 // pred_check
        _
      $region119: #{seq2seq_forward.1} parent=94 // pred_check_branch
        %2383 = sbr.rel target = $region121
      $region120: #{seq2seq_forward.1} parent=94 // pred_region
        _
      $region121: #{seq2seq_forward.1} parent=94 // pred_fallthru
        _
    $region95: #{seq2seq_forward.1} parent=84 // pred_fallthru
      _
    // Predicated region
    $region96: #{seq2seq_forward.1} parent=84 // pred_check
      _
    $region97: #{seq2seq_forward.1} parent=84 // pred_check_branch
      %2357 = sbr.rel target = $region99
    $region98: #{seq2seq_forward.1} parent=84 // pred_region
      %s2359 = ssub.s32 256, 1
      loop: start=0, step=1, limit=1
      $region100: #{seq2seq_forward.1} parent=98 // loop_pre_header
        _
      $region101: #{seq2seq_forward.1} parent=98 // loop_header
        %s2361 = sphi 0, %s2365
        %p2362 = scmp.ge.s32.totalorder %s2361, 1
        %s2366 = sphi %s2347, %s2347
        %s2367 = sphi %s2352, %s2352
      $region102: #{seq2seq_forward.1} parent=98 // loop_header_branch
        %2364 = sbr.rel (%p2362) target = $region106
      $region103: #{seq2seq_forward.1} parent=98 // loop_body
        %v2368 = vld [vmem:[%s2366] sm:%s2359]
        %2369 = vst [vmem:[%s2367] sm:%s2359] %v2368
      $region104: #{seq2seq_forward.1} parent=98 // loop_footer
        %s2365 = sadd.s32 1, %s2361
      $region105: #{seq2seq_forward.1} parent=98 // loop_footer_branch
        %2360 = sbr.rel target = $region101
      $region106: #{seq2seq_forward.1} parent=98 // loop_exit
        _
    $region99: #{seq2seq_forward.1} parent=84 // pred_fallthru
      _
    // Predicated region
    $region122: #{seq2seq_forward.1} parent=84 // pred_check
      _
    $region123: #{seq2seq_forward.1} parent=84 // pred_check_branch
      %2386 = sbr.rel (0) target = $region125
    $region124: #{seq2seq_forward.1} parent=84 // pred_region
      %2387 = vsyncadd %s2353, 128
    $region125: #{seq2seq_forward.1} parent=84 // pred_fallthru
      _
    %vm2388 = vcmp.ge.f32.partialorder %v2313, %v2317
    %v2389 = vsel %vm2388, %v1069, 128
    %v2390 = vand.u32 %v2389, 65535
    %v2391 = vshra.s32 %v2389, 16
    %v2392 = vcvt.s32.f32 %v2390
    %v2393 = vcvt.s32.f32 %v2391
    %2394 = vmin.xlane.f32.xlu0 %v2393
    %v2395 = vpop.xlane.xlu0 %2394
    %vm2396 = vcmp.eq.f32.partialorder %v2393, %v2395
    %v2397 = vsel %vm2396, %v2392, inf
    %2398 = vmin.xlane.f32.xlu0 %v2397
    %v2399 = vpop.xlane.xlu0 %2398
    %v2400 = vcvt.f32.s32 %v2399
    %v2401 = vcvt.f32.s32 %v2395
    %v2402 = vshll.u32 %v2401, 16
    %v2403 = vadd.s32 %v2402, %v2400
    %vm2404 = vcmp.eq.s32.totalorder %v1069, %v2403
    %v2405 = vsel %vm2404, 1, 0
    %v2406 = vcvt.s32.f32 %v2405
    %v2407 = vpack.c.bf16 %v2406, %v2406
    %v2408 = vld [vmem:[%s5] sm:$0xf]
    %v2409 = vld [vmem:[%s5 + $0x4] sm:$0xf]
    %v2410 = vld [vmem:[%s5 + $0x8] sm:$0xf]
    %v2411 = vld [vmem:[%s5 + $0xc] sm:$0xf]
    %v2412 = vld [vmem:[%s5 + $0x10] sm:$0xf]
    %v2413 = vld [vmem:[%s5 + $0x14] sm:$0xf]
    %v2414 = vld [vmem:[%s5 + $0x18] sm:$0xf]
    %v2415 = vld [vmem:[%s5 + $0x1c] sm:$0xf]
    %v2416 = vld [vmem:[%s5 + $0x20] sm:$0xf]
    %v2417 = vld [vmem:[%s5 + $0x24] sm:$0xf]
    %v2418 = vld [vmem:[%s5 + $0x28] sm:$0xf]
    %v2419 = vld [vmem:[%s5 + $0x2c] sm:$0xf]
    %v2420 = vld [vmem:[%s5 + $0x30] sm:$0xf]
    %v2421 = vld [vmem:[%s5 + $0x34] sm:$0xf]
    %v2422 = vld [vmem:[%s5 + $0x38] sm:$0xf]
    %v2423 = vld [vmem:[%s5 + $0x3c] sm:$0xf]
    %v2440 = vunpack.c.l.b16 %v2408
    %v2441 = vunpack.c.l.b16 %v2409
    %v2442 = vunpack.c.l.b16 %v2410
    %v2443 = vunpack.c.l.b16 %v2411
    %v2444 = vunpack.c.l.b16 %v2412
    %v2445 = vunpack.c.l.b16 %v2413
    %v2446 = vunpack.c.l.b16 %v2414
    %v2447 = vunpack.c.l.b16 %v2415
    %v2448 = vunpack.c.l.b16 %v2416
    %v2449 = vunpack.c.l.b16 %v2417
    %v2450 = vunpack.c.l.b16 %v2418
    %v2451 = vunpack.c.l.b16 %v2419
    %v2452 = vunpack.c.l.b16 %v2420
    %v2453 = vunpack.c.l.b16 %v2421
    %v2454 = vunpack.c.l.b16 %v2422
    %v2455 = vunpack.c.l.b16 %v2423
    %v2456 = vpack.c.b16 %v2441, %v2440
    %v2457 = vpack.c.b16 %v2443, %v2442
    %v2458 = vpack.c.b16 %v2445, %v2444
    %v2459 = vpack.c.b16 %v2447, %v2446
    %v2460 = vpack.c.b16 %v2449, %v2448
    %v2461 = vpack.c.b16 %v2451, %v2450
    %v2462 = vpack.c.b16 %v2453, %v2452
    %v2463 = vpack.c.b16 %v2455, %v2454
    %2472 = vmatpush.bf16.msra.mxu0 %v2463
    %2473 = vmatpush.bf16.msra.mxu0 %v2462
    %2474 = vmatpush.bf16.msra.mxu0 %v2461
    %2475 = vmatpush.bf16.msra.mxu0 %v2460
    %2476 = vmatpush.bf16.msra.mxu0 %v2459
    %2477 = vmatpush.bf16.msra.mxu0 %v2458
    %2478 = vmatpush.bf16.msra.mxu0 %v2457
    %2479 = vmatpush.bf16.msra.mxu0 %v2456
    %2480 = vmatmul.bf16.gmra.mxu0 %v2407
    %v2481 = vpop.f32.mrf.mxu0
    %v2482 = vadd.f32 0.0, %v2481
    %v2483 = vpop.f32.mrf.mxu0
    %2484 = vdwg.mxu0
  $region85: #{seq2seq_forward.1} parent=0 // loop_footer
    %s1076 = sadd.s32 1, %s1072
  $region86: #{seq2seq_forward.1} parent=0 // loop_footer_branch
    %1071 = sbr.rel target = $region82
  $region87: #{seq2seq_forward.1} parent=0 // loop_exit
    _
  %s2485 = scalar_lea.sflag [#allocation5], 1
  %s2486 = smul.u32 8, 1
  %s2487 = sshll.u32 %s2486, 4
  %2488 = dma.done %s2485, %s2487
  %s2489 = sshll.u32 %s2486, 4
  %2490 = dma.done [#allocation5], %s2489
  %2491 = vsyncmov [#allocation5]
  %s2492 = vpop.sfrf %2491
  %p2493 = scmp.eq.s32.totalorder %s2492, 0
  %p2494 = pneg %p2493
  %2496 = shalt.err (%p2494)
  %s2497 = scalar_lea.sflag [#allocation5], 1
  %2498 = vsyncmov %s2497
  %s2499 = vpop.sfrf %2498
  %p2500 = scmp.eq.s32.totalorder %s2499, 0
  %p2501 = pneg %p2500
  %2503 = shalt.err (%p2501)

</llo_original>
